<compile_context>
chip_gen: v7x
topology: tpu7x:2x2x1
jax: 0.10.0
libtpu: 0.0.40
codegen_flags: <defaults>
</compile_context>

<pallas_src>
import functools

import jax
import jax.numpy as jnp
from jax import lax
from jax.experimental import pallas as pl
from jax.experimental.pallas import tpu as pltpu

_LANE = 128           # TPU lane width (last-dim tile)
_SUBLANE = 8          # TPU sublane width (second-to-last-dim tile)
_P_DROP = 0.2
_MAX_BATCH_TILE = 256  # fills the 256-row MXU on v6e/v7x; fine on v5e as well


def _round_up(n, m):
    return ((n + m - 1) // m) * m


def _uniform_bits_u32(shape, row_offset_u32, seed_u32, salt):
    """Stateless counter-based PRNG (lowbias32-style finalizer) on the VPU.

    Bits are a pure function of (global_row, col, seed, layer_salt), so the
    dropout mask is deterministic per seed and independent of batch tiling /
    core assignment.  Replaces pltpu.prng_* (no interpret/CPU lowering).
    """
    rows = lax.broadcasted_iota(jnp.uint32, shape, 0) + row_offset_u32
    cols = lax.broadcasted_iota(jnp.uint32, shape, 1)
    x = rows * jnp.uint32(0x9E3779B1)
    x = x ^ (cols * jnp.uint32(0x85EBCA77))
    x = x + seed_u32 * jnp.uint32(0xC2B2AE3D) + jnp.uint32(salt)
    x = x ^ (x >> jnp.uint32(16))
    x = x * jnp.uint32(0x7FEB352D)
    x = x ^ (x >> jnp.uint32(15))
    x = x * jnp.uint32(0x846CA68B)
    x = x ^ (x >> jnp.uint32(16))
    return x


# ---------------------------------------------------------------------------
# Fused kernel: dropout(relu(x@W+b)) x4  ->  x@W5+b5, one launch per forward.
# ---------------------------------------------------------------------------
def _mlp_fused_kernel(seed_ref, x_ref,
                      w1_ref, b1_ref, w2_ref, b2_ref, w3_ref, b3_ref,
                      w4_ref, b4_ref, w5_ref, b5_ref, o_ref,
                      *, p_drop, training, batch_tile):
    use_dropout = bool(training) and p_drop > 0.0
    if use_dropout:
        seed_u32 = seed_ref[0].astype(jnp.uint32)
        row0_u32 = (pl.program_id(0) * batch_tile).astype(jnp.uint32)
        # keep iff bits >= p * 2^32  (integer threshold compare, no float convert)
        thresh = jnp.uint32(min(int(round(p_drop * (2.0 ** 32))), 2 ** 32 - 1))
        scale = jnp.float32(1.0 / (1.0 - p_drop))

    def hidden_layer(x, w_ref, b_ref, salt):
        y = jnp.dot(x, w_ref[...], preferred_element_type=jnp.float32)
        y = jnp.maximum(y + b_ref[...], 0.0)          # bias + ReLU on the VPU
        if use_dropout:
            bits = _uniform_bits_u32(y.shape, row0_u32, seed_u32, salt)
            y = jnp.where(bits >= thresh, y * scale, jnp.float32(0.0))
        return y

    h = hidden_layer(x_ref[...], w1_ref, b1_ref, 0x0101)
    h = hidden_layer(h, w2_ref, b2_ref, 0x0202)
    h = hidden_layer(h, w3_ref, b3_ref, 0x0303)
    h = hidden_layer(h, w4_ref, b4_ref, 0x0404)
    # Final layer: no activation / dropout.  Output dim is lane-padded to a
    # multiple of 128 by the wrapper, so this store is a dense (unmasked) vst.
    o_ref[...] = (jnp.dot(h, w5_ref[...], preferred_element_type=jnp.float32)
                  + b5_ref[...])


# ---------------------------------------------------------------------------
# Wrapper: pad / tile, one pallas_call, slice back.
# ---------------------------------------------------------------------------
def _whole_array_spec(a):
    nd = a.ndim
    return pl.BlockSpec(a.shape, lambda *grid_idx: (0,) * nd)


def model_dropout_forward(params, state, *, training=True, seed=0, p_drop=_P_DROP):
    """Equivalent of ModelDropout.forward(state)."""
    (w1, b1), (w2, b2), (w3, b3), (w4, b4), (w5, b5) = params
    batch, in_dim = state.shape
    n_actions = w5.shape[1]

    # Lane-dense final output: pad last layer's out-dim to a multiple of 128.
    n_out = _round_up(max(n_actions, _LANE), _LANE)
    if n_out != n_actions:
        w5p = jnp.zeros((w5.shape[0], n_out), w5.dtype).at[:, :n_actions].set(w5)
        b5p = jnp.zeros((1, n_out), b5.dtype).at[:, :n_actions].set(b5)
    else:
        w5p, b5p = w5, b5

    # Batch tiling: up to 256 rows per grid step, padded to a sublane multiple.
    bt = min(_round_up(batch, _SUBLANE), _MAX_BATCH_TILE)
    batch_pad = _round_up(batch, bt)
    xp = state
    if batch_pad != batch:
        xp = jnp.zeros((batch_pad, in_dim), state.dtype).at[:batch].set(state)
    grid = (batch_pad // bt,)

    # Seed is a traced SMEM scalar (no recompile per seed, no baked-in mask).
    seed_arr = jnp.atleast_1d(jnp.asarray(seed, dtype=jnp.int32))

    kernel = functools.partial(_mlp_fused_kernel, p_drop=float(p_drop),
                               training=bool(training), batch_tile=bt)

    compiler_params = None
    if jax.default_backend() == "tpu":
        # Batch axis can be split across v7x's two TensorCores.
        compiler_params = pltpu.CompilerParams(dimension_semantics=("parallel",))

    out = pl.pallas_call(
        kernel,
        out_shape=jax.ShapeDtypeStruct((batch_pad, n_out), jnp.float32),
        grid=grid,
        in_specs=[
            pl.BlockSpec(memory_space=pltpu.MemorySpace.SMEM),     # seed scalar
            pl.BlockSpec((bt, in_dim), lambda i: (i, 0)),          # x (batch tiled)
            _whole_array_spec(w1), _whole_array_spec(b1),          # all weights stay
            _whole_array_spec(w2), _whole_array_spec(b2),          # resident in VMEM
            _whole_array_spec(w3), _whole_array_spec(b3),
            _whole_array_spec(w4), _whole_array_spec(b4),
            _whole_array_spec(w5p), _whole_array_spec(b5p),
        ],
        out_specs=pl.BlockSpec((bt, n_out), lambda i: (i, 0)),
        compiler_params=compiler_params,
    )(seed_arr, xp, w1, b1, w2, b2, w3, b3, w4, b4, w5p, b5p)

    return out[:batch, :n_actions]


# ---------------------------------------------------------------------------
# Parameter init (mimics nn.Linear's U(-1/sqrt(fan_in), 1/sqrt(fan_in)))
# ---------------------------------------------------------------------------
def init_params(key, input_dims, n_actions):
    dims = [(input_dims, 512), (512, 512), (512, 512), (512, 256), (256, n_actions)]
    params = []
    for (fan_in, fan_out) in dims:
        key, kw, kb = jax.random.split(key, 3)
        bound = 1.0 / (fan_in ** 0.5)
        w = jax.random.uniform(kw, (fan_in, fan_out), jnp.float32, -bound, bound)
        b = jax.random.uniform(kb, (1, fan_out), jnp.float32, -bound, bound)
        params.append((w, b))
    return params


# ---------------------------------------------------------------------------
# Main
# ---------------------------------------------------------------------------
if __name__ == "__main__":
    key = jax.random.PRNGKey(0)
    k_params, k_state = jax.random.split(key)

    batch = 8
    input_dims = 32
    n_actions = 4

    params = init_params(k_params, input_dims, n_actions)
    state = jax.random.normal(k_state, (batch, input_dims), jnp.float32)

    # Train-mode forward (inverted dropout, mask generated inside the kernel).
    actions_train = model_dropout_forward(params, state, training=True, seed=1234)
    actions_train = jax.block_until_ready(actions_train)
    assert actions_train.shape == (batch, n_actions)
    assert bool(jnp.all(jnp.isfinite(actions_train)))

    # Eval-mode forward (dropout = identity) vs. pure-JAX reference.
    actions_eval = model_dropout_forward(params, state, training=False)
    actions_eval = jax.block_until_ready(actions_eval)

    def ref_forward(params, x):
        for (w, b) in params[:-1]:
            x = jnp.maximum(x @ w + b, 0.0)
        w, b = params[-1]
        return x @ w + b

    ref = ref_forward(params, state)
    # Tolerance accommodates default-precision MXU matmuls vs. the XLA reference.
    assert jnp.allclose(actions_eval, ref, atol=2e-2, rtol=2e-2), "eval-mode mismatch"
    # Dropout must actually perturb the output in train mode.
    assert not jnp.allclose(actions_train, actions_eval), "dropout had no effect"

    print("KERNEL_OK")
</pallas_src>

<mosaic_0001>
module attributes {stable_mosaic.version = 11 : i64} {
  func.func @_mlp_fused_kernel(%arg0: i32, %arg1: memref<1xi32, #tpu.memory_space<smem>>, %arg2: memref<8x32xf32, #tpu.memory_space<vmem>>, %arg3: memref<32x512xf32, #tpu.memory_space<vmem>>, %arg4: memref<1x512xf32, #tpu.memory_space<vmem>>, %arg5: memref<512x512xf32, #tpu.memory_space<vmem>>, %arg6: memref<1x512xf32, #tpu.memory_space<vmem>>, %arg7: memref<512x512xf32, #tpu.memory_space<vmem>>, %arg8: memref<1x512xf32, #tpu.memory_space<vmem>>, %arg9: memref<512x256xf32, #tpu.memory_space<vmem>>, %arg10: memref<1x256xf32, #tpu.memory_space<vmem>>, %arg11: memref<256x128xf32, #tpu.memory_space<vmem>>, %arg12: memref<1x128xf32, #tpu.memory_space<vmem>>, %arg13: memref<8x128xf32, #tpu.memory_space<vmem>>) attributes {dimension_semantics = [#tpu.dimension_semantics<arbitrary>], iteration_bounds = array<i64: 1>, scalar_prefetch = 0 : i64, scratch_operands = 0 : i64, tpu.core_type = #tpu.core_type<tc>, window_params = [{transform_indices = @transform_0, window_bounds = array<i64: 1>}, {transform_indices = @transform_1, window_bounds = array<i64: 8, 32>}, {pipeline_mode = #tpu.pipeline_mode<synchronous>, transform_indices = @transform_2, window_bounds = array<i64: 32, 512>}, {pipeline_mode = #tpu.pipeline_mode<synchronous>, transform_indices = @transform_3, window_bounds = array<i64: 1, 512>}, {pipeline_mode = #tpu.pipeline_mode<synchronous>, transform_indices = @transform_4, window_bounds = array<i64: 512, 512>}, {pipeline_mode = #tpu.pipeline_mode<synchronous>, transform_indices = @transform_5, window_bounds = array<i64: 1, 512>}, {pipeline_mode = #tpu.pipeline_mode<synchronous>, transform_indices = @transform_6, window_bounds = array<i64: 512, 512>}, {pipeline_mode = #tpu.pipeline_mode<synchronous>, transform_indices = @transform_7, window_bounds = array<i64: 1, 512>}, {pipeline_mode = #tpu.pipeline_mode<synchronous>, transform_indices = @transform_8, window_bounds = array<i64: 512, 256>}, {pipeline_mode = #tpu.pipeline_mode<synchronous>, transform_indices = @transform_9, window_bounds = array<i64: 1, 256>}, {pipeline_mode = #tpu.pipeline_mode<synchronous>, transform_indices = @transform_10, window_bounds = array<i64: 256, 128>}, {pipeline_mode = #tpu.pipeline_mode<synchronous>, transform_indices = @transform_11, window_bounds = array<i64: 1, 128>}, {transform_indices = @transform_12, window_bounds = array<i64: 8, 128>}]} {
    %c0 = arith.constant 0 : index
    %0 = memref.load %arg1[%c0] : memref<1xi32, #tpu.memory_space<smem>>
    %c8_i32 = arith.constant 8 : i32
    %1 = arith.muli %arg0, %c8_i32 : i32
    %c0_0 = arith.constant 0 : index
    %c0_1 = arith.constant 0 : index
    %2 = vector.load %arg2[%c0_0, %c0_1] : memref<8x32xf32, #tpu.memory_space<vmem>>, vector<8x32xf32>
    %c0_2 = arith.constant 0 : index
    %c0_3 = arith.constant 0 : index
    %3 = vector.load %arg3[%c0_2, %c0_3] : memref<32x512xf32, #tpu.memory_space<vmem>>, vector<32x512xf32>
    %cst = arith.constant dense<0.000000e+00> : vector<8x512xf32>
    %4 = tpu.matmul %2, %3, %cst {dimension_numbers = #tpu.dot_dimension_numbers<[1], [0], [0], [1], [0, 0, 1, 1], [], []>} : vector<8x32xf32>, vector<32x512xf32>, vector<8x512xf32> -> vector<8x512xf32>
    %c0_4 = arith.constant 0 : index
    %c0_5 = arith.constant 0 : index
    %5 = vector.load %arg4[%c0_4, %c0_5] : memref<1x512xf32, #tpu.memory_space<vmem>>, vector<1x512xf32>
    %6 = vector.broadcast %5 : vector<1x512xf32> to vector<8x512xf32>
    %7 = arith.addf %4, %6 : vector<8x512xf32>
    %cst_6 = arith.constant 0.000000e+00 : f32
    %8 = vector.broadcast %cst_6 : f32 to vector<8x512xf32>
    %9 = arith.maximumf %7, %8 : vector<8x512xf32>
    %10 = tpu.iota {dimensions = array<i32: 0>} : vector<8x512xi32>
    %11 = vector.broadcast %1 : i32 to vector<8x512xi32>
    %12 = arith.addi %10, %11 : vector<8x512xi32>
    %13 = tpu.iota {dimensions = array<i32: 1>} : vector<8x512xi32>
    %c-1640531535_i32 = arith.constant -1640531535 : i32
    %14 = vector.broadcast %c-1640531535_i32 : i32 to vector<8x512xi32>
    %15 = arith.muli %12, %14 : vector<8x512xi32>
    %c-2048144777_i32 = arith.constant -2048144777 : i32
    %16 = vector.broadcast %c-2048144777_i32 : i32 to vector<8x512xi32>
    %17 = arith.muli %13, %16 : vector<8x512xi32>
    %18 = arith.xori %15, %17 : vector<8x512xi32>
    %c-1028477379_i32 = arith.constant -1028477379 : i32
    %19 = arith.muli %0, %c-1028477379_i32 : i32
    %20 = vector.broadcast %19 : i32 to vector<8x512xi32>
    %21 = arith.addi %18, %20 : vector<8x512xi32>
    %c257_i32 = arith.constant 257 : i32
    %22 = vector.broadcast %c257_i32 : i32 to vector<8x512xi32>
    %23 = arith.addi %21, %22 : vector<8x512xi32>
    %c16_i32 = arith.constant 16 : i32
    %24 = vector.broadcast %c16_i32 : i32 to vector<8x512xi32>
    %25 = arith.shrui %23, %24 : vector<8x512xi32>
    %26 = arith.xori %23, %25 : vector<8x512xi32>
    %c2146121005_i32 = arith.constant 2146121005 : i32
    %27 = vector.broadcast %c2146121005_i32 : i32 to vector<8x512xi32>
    %28 = arith.muli %26, %27 : vector<8x512xi32>
    %c15_i32 = arith.constant 15 : i32
    %29 = vector.broadcast %c15_i32 : i32 to vector<8x512xi32>
    %30 = arith.shrui %28, %29 : vector<8x512xi32>
    %31 = arith.xori %28, %30 : vector<8x512xi32>
    %c-2073254261_i32 = arith.constant -2073254261 : i32
    %32 = vector.broadcast %c-2073254261_i32 : i32 to vector<8x512xi32>
    %33 = arith.muli %31, %32 : vector<8x512xi32>
    %c16_i32_7 = arith.constant 16 : i32
    %34 = vector.broadcast %c16_i32_7 : i32 to vector<8x512xi32>
    %35 = arith.shrui %33, %34 : vector<8x512xi32>
    %36 = arith.xori %33, %35 : vector<8x512xi32>
    %c858993459_i32 = arith.constant 858993459 : i32
    %37 = vector.broadcast %c858993459_i32 : i32 to vector<8x512xi32>
    %38 = arith.cmpi uge, %36, %37 : vector<8x512xi32>
    %cst_8 = arith.constant 1.250000e+00 : f32
    %39 = vector.broadcast %cst_8 : f32 to vector<8x512xf32>
    %40 = arith.mulf %9, %39 : vector<8x512xf32>
    %cst_9 = arith.constant 0.000000e+00 : f32
    %41 = vector.broadcast %cst_9 : f32 to vector<8x512xf32>
    %42 = arith.select %38, %40, %41 : vector<8x512xi1>, vector<8x512xf32>
    %c0_10 = arith.constant 0 : index
    %c0_11 = arith.constant 0 : index
    %43 = vector.load %arg5[%c0_10, %c0_11] : memref<512x512xf32, #tpu.memory_space<vmem>>, vector<512x512xf32>
    %cst_12 = arith.constant dense<0.000000e+00> : vector<8x512xf32>
    %44 = tpu.matmul %42, %43, %cst_12 {dimension_numbers = #tpu.dot_dimension_numbers<[1], [0], [0], [1], [0, 0, 1, 1], [], []>} : vector<8x512xf32>, vector<512x512xf32>, vector<8x512xf32> -> vector<8x512xf32>
    %c0_13 = arith.constant 0 : index
    %c0_14 = arith.constant 0 : index
    %45 = vector.load %arg6[%c0_13, %c0_14] : memref<1x512xf32, #tpu.memory_space<vmem>>, vector<1x512xf32>
    %46 = vector.broadcast %45 : vector<1x512xf32> to vector<8x512xf32>
    %47 = arith.addf %44, %46 : vector<8x512xf32>
    %cst_15 = arith.constant 0.000000e+00 : f32
    %48 = vector.broadcast %cst_15 : f32 to vector<8x512xf32>
    %49 = arith.maximumf %47, %48 : vector<8x512xf32>
    %50 = tpu.iota {dimensions = array<i32: 0>} : vector<8x512xi32>
    %51 = vector.broadcast %1 : i32 to vector<8x512xi32>
    %52 = arith.addi %50, %51 : vector<8x512xi32>
    %53 = tpu.iota {dimensions = array<i32: 1>} : vector<8x512xi32>
    %c-1640531535_i32_16 = arith.constant -1640531535 : i32
    %54 = vector.broadcast %c-1640531535_i32_16 : i32 to vector<8x512xi32>
    %55 = arith.muli %52, %54 : vector<8x512xi32>
    %c-2048144777_i32_17 = arith.constant -2048144777 : i32
    %56 = vector.broadcast %c-2048144777_i32_17 : i32 to vector<8x512xi32>
    %57 = arith.muli %53, %56 : vector<8x512xi32>
    %58 = arith.xori %55, %57 : vector<8x512xi32>
    %c-1028477379_i32_18 = arith.constant -1028477379 : i32
    %59 = arith.muli %0, %c-1028477379_i32_18 : i32
    %60 = vector.broadcast %59 : i32 to vector<8x512xi32>
    %61 = arith.addi %58, %60 : vector<8x512xi32>
    %c514_i32 = arith.constant 514 : i32
    %62 = vector.broadcast %c514_i32 : i32 to vector<8x512xi32>
    %63 = arith.addi %61, %62 : vector<8x512xi32>
    %c16_i32_19 = arith.constant 16 : i32
    %64 = vector.broadcast %c16_i32_19 : i32 to vector<8x512xi32>
    %65 = arith.shrui %63, %64 : vector<8x512xi32>
    %66 = arith.xori %63, %65 : vector<8x512xi32>
    %c2146121005_i32_20 = arith.constant 2146121005 : i32
    %67 = vector.broadcast %c2146121005_i32_20 : i32 to vector<8x512xi32>
    %68 = arith.muli %66, %67 : vector<8x512xi32>
    %c15_i32_21 = arith.constant 15 : i32
    %69 = vector.broadcast %c15_i32_21 : i32 to vector<8x512xi32>
    %70 = arith.shrui %68, %69 : vector<8x512xi32>
    %71 = arith.xori %68, %70 : vector<8x512xi32>
    %c-2073254261_i32_22 = arith.constant -2073254261 : i32
    %72 = vector.broadcast %c-2073254261_i32_22 : i32 to vector<8x512xi32>
    %73 = arith.muli %71, %72 : vector<8x512xi32>
    %c16_i32_23 = arith.constant 16 : i32
    %74 = vector.broadcast %c16_i32_23 : i32 to vector<8x512xi32>
    %75 = arith.shrui %73, %74 : vector<8x512xi32>
    %76 = arith.xori %73, %75 : vector<8x512xi32>
    %c858993459_i32_24 = arith.constant 858993459 : i32
    %77 = vector.broadcast %c858993459_i32_24 : i32 to vector<8x512xi32>
    %78 = arith.cmpi uge, %76, %77 : vector<8x512xi32>
    %cst_25 = arith.constant 1.250000e+00 : f32
    %79 = vector.broadcast %cst_25 : f32 to vector<8x512xf32>
    %80 = arith.mulf %49, %79 : vector<8x512xf32>
    %cst_26 = arith.constant 0.000000e+00 : f32
    %81 = vector.broadcast %cst_26 : f32 to vector<8x512xf32>
    %82 = arith.select %78, %80, %81 : vector<8x512xi1>, vector<8x512xf32>
    %c0_27 = arith.constant 0 : index
    %c0_28 = arith.constant 0 : index
    %83 = vector.load %arg7[%c0_27, %c0_28] : memref<512x512xf32, #tpu.memory_space<vmem>>, vector<512x512xf32>
    %cst_29 = arith.constant dense<0.000000e+00> : vector<8x512xf32>
    %84 = tpu.matmul %82, %83, %cst_29 {dimension_numbers = #tpu.dot_dimension_numbers<[1], [0], [0], [1], [0, 0, 1, 1], [], []>} : vector<8x512xf32>, vector<512x512xf32>, vector<8x512xf32> -> vector<8x512xf32>
    %c0_30 = arith.constant 0 : index
    %c0_31 = arith.constant 0 : index
    %85 = vector.load %arg8[%c0_30, %c0_31] : memref<1x512xf32, #tpu.memory_space<vmem>>, vector<1x512xf32>
    %86 = vector.broadcast %85 : vector<1x512xf32> to vector<8x512xf32>
    %87 = arith.addf %84, %86 : vector<8x512xf32>
    %cst_32 = arith.constant 0.000000e+00 : f32
    %88 = vector.broadcast %cst_32 : f32 to vector<8x512xf32>
    %89 = arith.maximumf %87, %88 : vector<8x512xf32>
    %90 = tpu.iota {dimensions = array<i32: 0>} : vector<8x512xi32>
    %91 = vector.broadcast %1 : i32 to vector<8x512xi32>
    %92 = arith.addi %90, %91 : vector<8x512xi32>
    %93 = tpu.iota {dimensions = array<i32: 1>} : vector<8x512xi32>
    %c-1640531535_i32_33 = arith.constant -1640531535 : i32
    %94 = vector.broadcast %c-1640531535_i32_33 : i32 to vector<8x512xi32>
    %95 = arith.muli %92, %94 : vector<8x512xi32>
    %c-2048144777_i32_34 = arith.constant -2048144777 : i32
    %96 = vector.broadcast %c-2048144777_i32_34 : i32 to vector<8x512xi32>
    %97 = arith.muli %93, %96 : vector<8x512xi32>
    %98 = arith.xori %95, %97 : vector<8x512xi32>
    %c-1028477379_i32_35 = arith.constant -1028477379 : i32
    %99 = arith.muli %0, %c-1028477379_i32_35 : i32
    %100 = vector.broadcast %99 : i32 to vector<8x512xi32>
    %101 = arith.addi %98, %100 : vector<8x512xi32>
    %c771_i32 = arith.constant 771 : i32
    %102 = vector.broadcast %c771_i32 : i32 to vector<8x512xi32>
    %103 = arith.addi %101, %102 : vector<8x512xi32>
    %c16_i32_36 = arith.constant 16 : i32
    %104 = vector.broadcast %c16_i32_36 : i32 to vector<8x512xi32>
    %105 = arith.shrui %103, %104 : vector<8x512xi32>
    %106 = arith.xori %103, %105 : vector<8x512xi32>
    %c2146121005_i32_37 = arith.constant 2146121005 : i32
    %107 = vector.broadcast %c2146121005_i32_37 : i32 to vector<8x512xi32>
    %108 = arith.muli %106, %107 : vector<8x512xi32>
    %c15_i32_38 = arith.constant 15 : i32
    %109 = vector.broadcast %c15_i32_38 : i32 to vector<8x512xi32>
    %110 = arith.shrui %108, %109 : vector<8x512xi32>
    %111 = arith.xori %108, %110 : vector<8x512xi32>
    %c-2073254261_i32_39 = arith.constant -2073254261 : i32
    %112 = vector.broadcast %c-2073254261_i32_39 : i32 to vector<8x512xi32>
    %113 = arith.muli %111, %112 : vector<8x512xi32>
    %c16_i32_40 = arith.constant 16 : i32
    %114 = vector.broadcast %c16_i32_40 : i32 to vector<8x512xi32>
    %115 = arith.shrui %113, %114 : vector<8x512xi32>
    %116 = arith.xori %113, %115 : vector<8x512xi32>
    %c858993459_i32_41 = arith.constant 858993459 : i32
    %117 = vector.broadcast %c858993459_i32_41 : i32 to vector<8x512xi32>
    %118 = arith.cmpi uge, %116, %117 : vector<8x512xi32>
    %cst_42 = arith.constant 1.250000e+00 : f32
    %119 = vector.broadcast %cst_42 : f32 to vector<8x512xf32>
    %120 = arith.mulf %89, %119 : vector<8x512xf32>
    %cst_43 = arith.constant 0.000000e+00 : f32
    %121 = vector.broadcast %cst_43 : f32 to vector<8x512xf32>
    %122 = arith.select %118, %120, %121 : vector<8x512xi1>, vector<8x512xf32>
    %c0_44 = arith.constant 0 : index
    %c0_45 = arith.constant 0 : index
    %123 = vector.load %arg9[%c0_44, %c0_45] : memref<512x256xf32, #tpu.memory_space<vmem>>, vector<512x256xf32>
    %cst_46 = arith.constant dense<0.000000e+00> : vector<8x256xf32>
    %124 = tpu.matmul %122, %123, %cst_46 {dimension_numbers = #tpu.dot_dimension_numbers<[1], [0], [0], [1], [0, 0, 1, 1], [], []>} : vector<8x512xf32>, vector<512x256xf32>, vector<8x256xf32> -> vector<8x256xf32>
    %c0_47 = arith.constant 0 : index
    %c0_48 = arith.constant 0 : index
    %125 = vector.load %arg10[%c0_47, %c0_48] : memref<1x256xf32, #tpu.memory_space<vmem>>, vector<1x256xf32>
    %126 = vector.broadcast %125 : vector<1x256xf32> to vector<8x256xf32>
    %127 = arith.addf %124, %126 : vector<8x256xf32>
    %cst_49 = arith.constant 0.000000e+00 : f32
    %128 = vector.broadcast %cst_49 : f32 to vector<8x256xf32>
    %129 = arith.maximumf %127, %128 : vector<8x256xf32>
    %130 = tpu.iota {dimensions = array<i32: 0>} : vector<8x256xi32>
    %131 = vector.broadcast %1 : i32 to vector<8x256xi32>
    %132 = arith.addi %130, %131 : vector<8x256xi32>
    %133 = tpu.iota {dimensions = array<i32: 1>} : vector<8x256xi32>
    %c-1640531535_i32_50 = arith.constant -1640531535 : i32
    %134 = vector.broadcast %c-1640531535_i32_50 : i32 to vector<8x256xi32>
    %135 = arith.muli %132, %134 : vector<8x256xi32>
    %c-2048144777_i32_51 = arith.constant -2048144777 : i32
    %136 = vector.broadcast %c-2048144777_i32_51 : i32 to vector<8x256xi32>
    %137 = arith.muli %133, %136 : vector<8x256xi32>
    %138 = arith.xori %135, %137 : vector<8x256xi32>
    %c-1028477379_i32_52 = arith.constant -1028477379 : i32
    %139 = arith.muli %0, %c-1028477379_i32_52 : i32
    %140 = vector.broadcast %139 : i32 to vector<8x256xi32>
    %141 = arith.addi %138, %140 : vector<8x256xi32>
    %c1028_i32 = arith.constant 1028 : i32
    %142 = vector.broadcast %c1028_i32 : i32 to vector<8x256xi32>
    %143 = arith.addi %141, %142 : vector<8x256xi32>
    %c16_i32_53 = arith.constant 16 : i32
    %144 = vector.broadcast %c16_i32_53 : i32 to vector<8x256xi32>
    %145 = arith.shrui %143, %144 : vector<8x256xi32>
    %146 = arith.xori %143, %145 : vector<8x256xi32>
    %c2146121005_i32_54 = arith.constant 2146121005 : i32
    %147 = vector.broadcast %c2146121005_i32_54 : i32 to vector<8x256xi32>
    %148 = arith.muli %146, %147 : vector<8x256xi32>
    %c15_i32_55 = arith.constant 15 : i32
    %149 = vector.broadcast %c15_i32_55 : i32 to vector<8x256xi32>
    %150 = arith.shrui %148, %149 : vector<8x256xi32>
    %151 = arith.xori %148, %150 : vector<8x256xi32>
    %c-2073254261_i32_56 = arith.constant -2073254261 : i32
    %152 = vector.broadcast %c-2073254261_i32_56 : i32 to vector<8x256xi32>
    %153 = arith.muli %151, %152 : vector<8x256xi32>
    %c16_i32_57 = arith.constant 16 : i32
    %154 = vector.broadcast %c16_i32_57 : i32 to vector<8x256xi32>
    %155 = arith.shrui %153, %154 : vector<8x256xi32>
    %156 = arith.xori %153, %155 : vector<8x256xi32>
    %c858993459_i32_58 = arith.constant 858993459 : i32
    %157 = vector.broadcast %c858993459_i32_58 : i32 to vector<8x256xi32>
    %158 = arith.cmpi uge, %156, %157 : vector<8x256xi32>
    %cst_59 = arith.constant 1.250000e+00 : f32
    %159 = vector.broadcast %cst_59 : f32 to vector<8x256xf32>
    %160 = arith.mulf %129, %159 : vector<8x256xf32>
    %cst_60 = arith.constant 0.000000e+00 : f32
    %161 = vector.broadcast %cst_60 : f32 to vector<8x256xf32>
    %162 = arith.select %158, %160, %161 : vector<8x256xi1>, vector<8x256xf32>
    %c0_61 = arith.constant 0 : index
    %c0_62 = arith.constant 0 : index
    %163 = vector.load %arg11[%c0_61, %c0_62] : memref<256x128xf32, #tpu.memory_space<vmem>>, vector<256x128xf32>
    %cst_63 = arith.constant dense<0.000000e+00> : vector<8x128xf32>
    %164 = tpu.matmul %162, %163, %cst_63 {dimension_numbers = #tpu.dot_dimension_numbers<[1], [0], [0], [1], [0, 0, 1, 1], [], []>} : vector<8x256xf32>, vector<256x128xf32>, vector<8x128xf32> -> vector<8x128xf32>
    %c0_64 = arith.constant 0 : index
    %c0_65 = arith.constant 0 : index
    %165 = vector.load %arg12[%c0_64, %c0_65] : memref<1x128xf32, #tpu.memory_space<vmem>>, vector<1x128xf32>
    %166 = vector.broadcast %165 : vector<1x128xf32> to vector<8x128xf32>
    %167 = arith.addf %164, %166 : vector<8x128xf32>
    %c0_66 = arith.constant 0 : index
    %c0_67 = arith.constant 0 : index
    %168 = vector.load %arg13[%c0_66, %c0_67] : memref<8x128xf32, #tpu.memory_space<vmem>>, vector<8x128xf32>
    tpu.vector_store %arg13[%c0_66, %c0_67], %167 {strides = array<i32>} : memref<8x128xf32, #tpu.memory_space<vmem>>, vector<8x128xf32>,
    return
  }
  func.func @transform_0(%arg0: i32) -> i32 {
    %c0_i32 = arith.constant 0 : i32
    %c0_i32_0 = arith.constant 0 : i32
    return %c0_i32 : i32
  }
  func.func @transform_1(%arg0: i32) -> (i32, i32) {
    %c0_i32 = arith.constant 0 : i32
    %c0_i32_0 = arith.constant 0 : i32
    return %arg0, %c0_i32 : i32, i32
  }
  func.func @transform_2(%arg0: i32) -> (i32, i32) {
    %c0_i32 = arith.constant 0 : i32
    %c0_i32_0 = arith.constant 0 : i32
    %c0_i32_1 = arith.constant 0 : i32
    return %c0_i32, %c0_i32_0 : i32, i32
  }
  func.func @transform_3(%arg0: i32) -> (i32, i32) {
    %c0_i32 = arith.constant 0 : i32
    %c0_i32_0 = arith.constant 0 : i32
    %c0_i32_1 = arith.constant 0 : i32
    return %c0_i32, %c0_i32_0 : i32, i32
  }
  func.func @transform_4(%arg0: i32) -> (i32, i32) {
    %c0_i32 = arith.constant 0 : i32
    %c0_i32_0 = arith.constant 0 : i32
    %c0_i32_1 = arith.constant 0 : i32
    return %c0_i32, %c0_i32_0 : i32, i32
  }
  func.func @transform_5(%arg0: i32) -> (i32, i32) {
    %c0_i32 = arith.constant 0 : i32
    %c0_i32_0 = arith.constant 0 : i32
    %c0_i32_1 = arith.constant 0 : i32
    return %c0_i32, %c0_i32_0 : i32, i32
  }
  func.func @transform_6(%arg0: i32) -> (i32, i32) {
    %c0_i32 = arith.constant 0 : i32
    %c0_i32_0 = arith.constant 0 : i32
    %c0_i32_1 = arith.constant 0 : i32
    return %c0_i32, %c0_i32_0 : i32, i32
  }
  func.func @transform_7(%arg0: i32) -> (i32, i32) {
    %c0_i32 = arith.constant 0 : i32
    %c0_i32_0 = arith.constant 0 : i32
    %c0_i32_1 = arith.constant 0 : i32
    return %c0_i32, %c0_i32_0 : i32, i32
  }
  func.func @transform_8(%arg0: i32) -> (i32, i32) {
    %c0_i32 = arith.constant 0 : i32
    %c0_i32_0 = arith.constant 0 : i32
    %c0_i32_1 = arith.constant 0 : i32
    return %c0_i32, %c0_i32_0 : i32, i32
  }
  func.func @transform_9(%arg0: i32) -> (i32, i32) {
    %c0_i32 = arith.constant 0 : i32
    %c0_i32_0 = arith.constant 0 : i32
    %c0_i32_1 = arith.constant 0 : i32
    return %c0_i32, %c0_i32_0 : i32, i32
  }
  func.func @transform_10(%arg0: i32) -> (i32, i32) {
    %c0_i32 = arith.constant 0 : i32
    %c0_i32_0 = arith.constant 0 : i32
    %c0_i32_1 = arith.constant 0 : i32
    return %c0_i32, %c0_i32_0 : i32, i32
  }
  func.func @transform_11(%arg0: i32) -> (i32, i32) {
    %c0_i32 = arith.constant 0 : i32
    %c0_i32_0 = arith.constant 0 : i32
    %c0_i32_1 = arith.constant 0 : i32
    return %c0_i32, %c0_i32_0 : i32, i32
  }
  func.func @transform_12(%arg0: i32) -> (i32, i32) {
    %c0_i32 = arith.constant 0 : i32
    %c0_i32_0 = arith.constant 0 : i32
    return %arg0, %c0_i32 : i32, i32
  }
}

</mosaic_0001>

<llo_original>
// kernel: tpu_custom_call.1
$region0: #{tpu_custom_call.1}
  #allocation0 [shape = 'u32[]', space=smem, size = 0x4, offset = 0x4, fixed_abs, tag = 'smem constant byte address 0x4 - core index']
  #allocation1 [shape = 'u32[144,128]{1,0:T(1,128)}', space=vmem, size = 0x12000, scoped, tag = 'internal scratch']
  #allocation2 [shape = 's32[1]{0:T(128)S(6)}', space=smem, size = 0x200, scoped, tag = 'scoped memory for tpu_custom_call.1']
  %s0 = inlined_call_operand.<no memory space> [shape: s32[1], index: 0, kind: input, shape index: {}]
  %s1 = inlined_call_operand.hbm [shape: f32[8,32], index: 1, kind: input, shape index: {}]
  %s2 = inlined_call_operand.hbm [shape: f32[32,512], index: 2, kind: input, shape index: {}]
  %s3 = inlined_call_operand.vmem [shape: f32[1,512], index: 3, kind: input, shape index: {}]
  %s4 = inlined_call_operand.hbm [shape: f32[512,512], index: 4, kind: input, shape index: {}]
  %s5 = inlined_call_operand.vmem [shape: f32[1,512], index: 5, kind: input, shape index: {}]
  %s6 = inlined_call_operand.hbm [shape: f32[512,512], index: 6, kind: input, shape index: {}]
  %s7 = inlined_call_operand.vmem [shape: f32[1,512], index: 7, kind: input, shape index: {}]
  %s8 = inlined_call_operand.hbm [shape: f32[512,256], index: 8, kind: input, shape index: {}]
  %s9 = inlined_call_operand.vmem [shape: f32[1,256], index: 9, kind: input, shape index: {}]
  %s10 = inlined_call_operand.hbm [shape: f32[256,128], index: 10, kind: input, shape index: {}]
  %s11 = inlined_call_operand.vmem [shape: f32[1,128], index: 11, kind: input, shape index: {}]
  %s12 = inlined_call_operand.hbm [shape: f32[8,128], index: 12, kind: output, shape index: {}]
  %s13 = sld [smem:[#allocation0]]
  $region82: #{tpu_custom_call.1} parent=0
    _
  %s15 = ssub.s32 1, %s13
  %s16 = scalar_select 0, %s15, %s13
  %17 = sst [smem:[#allocation2]] %s0
  $region1: #{tpu_custom_call.1} parent=0
    #allocation3 [shape = 'u8[4096]{0}', space=vmem, size = 0x1000, scoped, tag = 'input window, operand 1, single buffered']
    #allocation4 [shape = 's32[1]{0}', space=sflag, size = 0x4, scoped, tag = 'scoped memory for tpu_custom_call.1']
    #allocation5 [shape = 's32[1]{0}', space=sflag, size = 0x4, scoped, tag = 'scoped memory for tpu_custom_call.1']
    #allocation6 [shape = 'u8[65536]{0}', space=vmem, size = 0x10000, scoped, tag = 'input window, operand 2, single buffered']
    #allocation7 [shape = 's32[1]{0}', space=sflag, size = 0x4, scoped, tag = 'scoped memory for tpu_custom_call.1']
    #allocation8 [shape = 'u8[1048576]{0}', space=vmem, size = 0x100000, scoped, tag = 'input window, operand 4, single buffered']
    #allocation9 [shape = 'u8[1048576]{0}', space=vmem, size = 0x100000, scoped, tag = 'input window, operand 6, single buffered']
    #allocation10 [shape = 's32[1]{0}', space=sflag, size = 0x4, scoped, tag = 'scoped memory for tpu_custom_call.1']
    #allocation11 [shape = 'u8[524288]{0}', space=vmem, size = 0x80000, scoped, tag = 'input window, operand 8, single buffered']
    #allocation12 [shape = 'u8[131072]{0}', space=vmem, size = 0x20000, scoped, tag = 'input window, operand 10, single buffered']
    #allocation13 [shape = 's32[1]{0}', space=sflag, size = 0x4, scoped, tag = 'scoped memory for tpu_custom_call.1']
    #allocation14 [shape = 'u8[4096]{0}', space=vmem, size = 0x1000, scoped, tag = 'output window, operand 0, single buffered']
    %18 = vsyncpa [#allocation4], 0
    %19 = vsyncpa [#allocation7], 0
    %20 = vsyncpa [#allocation10], 0
    %21 = vsyncpa [#allocation13], 0
    %22 = vsyncpa [#allocation5], 0
    // Predicated region
    $region2: #{tpu_custom_call.1} parent=1 // pred_check
      _
    $region3: #{tpu_custom_call.1} parent=1 // pred_check_branch
      %24 = sbr.rel (0) target = $region5
    $region4: #{tpu_custom_call.1} parent=1 // pred_region
      _
    $region5: #{tpu_custom_call.1} parent=1 // pred_fallthru
      _
    // Predicated region
    $region6: #{tpu_custom_call.1} parent=1 // pred_check
      _
    $region7: #{tpu_custom_call.1} parent=1 // pred_check_branch
      %26 = sbr.rel (0) target = $region9
    $region8: #{tpu_custom_call.1} parent=1 // pred_region
      %s28 = ssub.s32 128, 128
      %29 = vsyncadd [#allocation4], %s28
      %s31 = sshll.u32 [#allocation3], 4
      %s32 = int_to_ptr.vmem [resolvable:$true] %s31
      %34 = dma.hbm_to_vmem [thread:$0]  %s1, 128, %s32, [#allocation4]
    $region9: #{tpu_custom_call.1} parent=1 // pred_fallthru
      _
    // Predicated region
    $region10: #{tpu_custom_call.1} parent=1 // pred_check
      _
    $region11: #{tpu_custom_call.1} parent=1 // pred_check_branch
      %36 = sbr.rel (0) target = $region13
    $region12: #{tpu_custom_call.1} parent=1 // pred_region
      %s38 = ssub.s32 2048, 2048
      %39 = vsyncadd [#allocation7], %s38
      %s40 = sshll.u32 [#allocation6], 4
      %s41 = int_to_ptr.vmem [resolvable:$true] %s40
      %46 = dma.hbm_to_vmem [thread:$0]  %s2, 2048, %s41, [#allocation7], 512, 512, 32
    $region13: #{tpu_custom_call.1} parent=1 // pred_fallthru
      _
    // Predicated region
    $region14: #{tpu_custom_call.1} parent=1 // pred_check
      _
    $region15: #{tpu_custom_call.1} parent=1 // pred_check_branch
      %48 = sbr.rel (0) target = $region17
    $region16: #{tpu_custom_call.1} parent=1 // pred_region
      _
    $region17: #{tpu_custom_call.1} parent=1 // pred_fallthru
      _
    // Predicated region
    $region18: #{tpu_custom_call.1} parent=1 // pred_check
      _
    $region19: #{tpu_custom_call.1} parent=1 // pred_check_branch
      %50 = sbr.rel (0) target = $region21
    $region20: #{tpu_custom_call.1} parent=1 // pred_region
      %s52 = ssub.s32 32768, 32768
      %53 = vsyncadd [#allocation7], %s52
      %s54 = sshll.u32 [#allocation8], 4
      %s55 = int_to_ptr.vmem [resolvable:$true] %s54
      %60 = dma.hbm_to_vmem [thread:$0]  %s4, 32768, %s55, [#allocation7], 512, 512, 32
    $region21: #{tpu_custom_call.1} parent=1 // pred_fallthru
      _
    // Predicated region
    $region22: #{tpu_custom_call.1} parent=1 // pred_check
      _
    $region23: #{tpu_custom_call.1} parent=1 // pred_check_branch
      %62 = sbr.rel (0) target = $region25
    $region24: #{tpu_custom_call.1} parent=1 // pred_region
      _
    $region25: #{tpu_custom_call.1} parent=1 // pred_fallthru
      _
    // Predicated region
    $region26: #{tpu_custom_call.1} parent=1 // pred_check
      _
    $region27: #{tpu_custom_call.1} parent=1 // pred_check_branch
      %64 = sbr.rel (0) target = $region29
    $region28: #{tpu_custom_call.1} parent=1 // pred_region
      %s66 = ssub.s32 32768, 32768
      %67 = vsyncadd [#allocation10], %s66
      %s68 = sshll.u32 [#allocation9], 4
      %s69 = int_to_ptr.vmem [resolvable:$true] %s68
      %74 = dma.hbm_to_vmem [thread:$0]  %s6, 32768, %s69, [#allocation10], 512, 512, 32
    $region29: #{tpu_custom_call.1} parent=1 // pred_fallthru
      _
    // Predicated region
    $region30: #{tpu_custom_call.1} parent=1 // pred_check
      _
    $region31: #{tpu_custom_call.1} parent=1 // pred_check_branch
      %76 = sbr.rel (0) target = $region33
    $region32: #{tpu_custom_call.1} parent=1 // pred_region
      _
    $region33: #{tpu_custom_call.1} parent=1 // pred_fallthru
      _
    // Predicated region
    $region34: #{tpu_custom_call.1} parent=1 // pred_check
      _
    $region35: #{tpu_custom_call.1} parent=1 // pred_check_branch
      %78 = sbr.rel (0) target = $region37
    $region36: #{tpu_custom_call.1} parent=1 // pred_region
      %s80 = ssub.s32 16384, 16384
      %81 = vsyncadd [#allocation10], %s80
      %s82 = sshll.u32 [#allocation11], 4
      %s83 = int_to_ptr.vmem [resolvable:$true] %s82
      %88 = dma.hbm_to_vmem [thread:$0]  %s8, 16384, %s83, [#allocation10], 256, 256, 16
    $region37: #{tpu_custom_call.1} parent=1 // pred_fallthru
      _
    // Predicated region
    $region38: #{tpu_custom_call.1} parent=1 // pred_check
      _
    $region39: #{tpu_custom_call.1} parent=1 // pred_check_branch
      %90 = sbr.rel (0) target = $region41
    $region40: #{tpu_custom_call.1} parent=1 // pred_region
      _
    $region41: #{tpu_custom_call.1} parent=1 // pred_fallthru
      _
    // Predicated region
    $region42: #{tpu_custom_call.1} parent=1 // pred_check
      _
    $region43: #{tpu_custom_call.1} parent=1 // pred_check_branch
      %92 = sbr.rel (0) target = $region45
    $region44: #{tpu_custom_call.1} parent=1 // pred_region
      %s94 = ssub.s32 4096, 4096
      %95 = vsyncadd [#allocation13], %s94
      %s96 = sshll.u32 [#allocation12], 4
      %s97 = int_to_ptr.vmem [resolvable:$true] %s96
      %102 = dma.hbm_to_vmem [thread:$0]  %s10, 4096, %s97, [#allocation13], 128, 128, 8
    $region45: #{tpu_custom_call.1} parent=1 // pred_fallthru
      _
    // Predicated region
    $region46: #{tpu_custom_call.1} parent=1 // pred_check
      _
    $region47: #{tpu_custom_call.1} parent=1 // pred_check_branch
      %104 = sbr.rel (0) target = $region49
    $region48: #{tpu_custom_call.1} parent=1 // pred_region
      _
    $region49: #{tpu_custom_call.1} parent=1 // pred_fallthru
      _
    // Predicated region
    $region50: #{tpu_custom_call.1} parent=1 // pred_check
      _
    $region51: #{tpu_custom_call.1} parent=1 // pred_check_branch
      %106 = sbr.rel (0) target = $region53
    $region52: #{tpu_custom_call.1} parent=1 // pred_region
      %107 = dma.done [#allocation4], 128
    $region53: #{tpu_custom_call.1} parent=1 // pred_fallthru
      _
    // Predicated region
    $region54: #{tpu_custom_call.1} parent=1 // pred_check
      _
    $region55: #{tpu_custom_call.1} parent=1 // pred_check_branch
      %109 = sbr.rel (0) target = $region57
    $region56: #{tpu_custom_call.1} parent=1 // pred_region
      %110 = dma.done [#allocation7], 2048
    $region57: #{tpu_custom_call.1} parent=1 // pred_fallthru
      _
    // Predicated region
    $region58: #{tpu_custom_call.1} parent=1 // pred_check
      _
    $region59: #{tpu_custom_call.1} parent=1 // pred_check_branch
      %112 = sbr.rel (0) target = $region61
    $region60: #{tpu_custom_call.1} parent=1 // pred_region
      %113 = dma.done [#allocation7], 32768
    $region61: #{tpu_custom_call.1} parent=1 // pred_fallthru
      _
    // Predicated region
    $region62: #{tpu_custom_call.1} parent=1 // pred_check
      _
    $region63: #{tpu_custom_call.1} parent=1 // pred_check_branch
      %115 = sbr.rel (0) target = $region65
    $region64: #{tpu_custom_call.1} parent=1 // pred_region
      %116 = dma.done [#allocation10], 32768
    $region65: #{tpu_custom_call.1} parent=1 // pred_fallthru
      _
    // Predicated region
    $region66: #{tpu_custom_call.1} parent=1 // pred_check
      _
    $region67: #{tpu_custom_call.1} parent=1 // pred_check_branch
      %118 = sbr.rel (0) target = $region69
    $region68: #{tpu_custom_call.1} parent=1 // pred_region
      %119 = dma.done [#allocation10], 16384
    $region69: #{tpu_custom_call.1} parent=1 // pred_fallthru
      _
    // Predicated region
    $region70: #{tpu_custom_call.1} parent=1 // pred_check
      _
    $region71: #{tpu_custom_call.1} parent=1 // pred_check_branch
      %121 = sbr.rel (0) target = $region73
    $region72: #{tpu_custom_call.1} parent=1 // pred_region
      %122 = dma.done [#allocation13], 4096
    $region73: #{tpu_custom_call.1} parent=1 // pred_fallthru
      _
    %s123 = sld [smem:[#allocation2]]
    %s124 = smul.u32 0, 8
    %v125 = vld [vmem:[#allocation3] sm:$0xff]
    %v126 = vld [vmem:[#allocation6] sm:$0xff]
    %v127 = vld [vmem:[#allocation6 + $0x8] sm:$0xff]
    %v128 = vld [vmem:[#allocation6 + $0x10] sm:$0xff]
    %v129 = vld [vmem:[#allocation6 + $0x18] sm:$0xff]
    %v130 = vld [vmem:[#allocation6 + $0x20] sm:$0xff]
    %v131 = vld [vmem:[#allocation6 + $0x28] sm:$0xff]
    %v132 = vld [vmem:[#allocation6 + $0x30] sm:$0xff]
    %v133 = vld [vmem:[#allocation6 + $0x38] sm:$0xff]
    %v134 = vld [vmem:[#allocation6 + $0x40] sm:$0xff]
    %v135 = vld [vmem:[#allocation6 + $0x48] sm:$0xff]
    %v136 = vld [vmem:[#allocation6 + $0x50] sm:$0xff]
    %v137 = vld [vmem:[#allocation6 + $0x58] sm:$0xff]
    %v138 = vld [vmem:[#allocation6 + $0x60] sm:$0xff]
    %v139 = vld [vmem:[#allocation6 + $0x68] sm:$0xff]
    %v140 = vld [vmem:[#allocation6 + $0x70] sm:$0xff]
    %v141 = vld [vmem:[#allocation6 + $0x78] sm:$0xff]
    %v142 = vld [vmem:[%s3] sm:$0xf]
    %v144 = vlaneseq
    %v145 = vshrl.u32 %v144, 7
    %v146 = vsub.s32 0, %v145
    %v147 = vrot.slane %v142, %v146
    %v148 = vlaneseq
    %v149 = vshrl.u32 %v148, 7
    %v150 = vsub.s32 1, %v149
    %v151 = vrot.slane %v142, %v150
    %v152 = vlaneseq
    %v153 = vshrl.u32 %v152, 7
    %v154 = vsub.s32 2, %v153
    %v155 = vrot.slane %v142, %v154
    %v156 = vlaneseq
    %v157 = vshrl.u32 %v156, 7
    %v158 = vsub.s32 3, %v157
    %v159 = vrot.slane %v142, %v158
    %vm164 = vcmask 261120
    %v166 = vsel %vm164, %v125, 0
    %168 = vmatprep.subr.mxu0 %v127
    %169 = vmatpush1.msra.mxu0 %v126
    %170 = vmatprep.subr.mxu0 %v131
    %171 = vmatpush1.msra.mxu0 %v130
    %172 = vmatprep.subr.mxu0 %v135
    %173 = vmatpush1.msra.mxu0 %v134
    %174 = vmatprep.subr.mxu0 %v139
    %175 = vmatpush1.msra.mxu0 %v138
    %176 = vmatprep.subr.mxu0 0.0
    %177 = vmatpush1.msra.mxu0 0.0
    %178 = vmatprep.subr.mxu0 0.0
    %179 = vmatpush1.msra.mxu0 0.0
    %180 = vmatprep.subr.mxu0 0.0
    %181 = vmatpush1.msra.mxu0 0.0
    %182 = vmatprep.subr.mxu0 0.0
    %183 = vmatpush1.msra.mxu0 0.0
    %184 = vmatprep.subr.mxu0 0.0
    %185 = vmatpush1.msra.mxu0 0.0
    %186 = vmatprep.subr.mxu0 0.0
    %187 = vmatpush1.msra.mxu0 0.0
    %188 = vmatprep.subr.mxu0 0.0
    %189 = vmatpush1.msra.mxu0 0.0
    %190 = vmatprep.subr.mxu0 0.0
    %191 = vmatpush1.msra.mxu0 0.0
    %192 = vmatprep.subr.mxu0 0.0
    %193 = vmatpush1.msra.mxu0 0.0
    %194 = vmatprep.subr.mxu0 0.0
    %195 = vmatpush1.msra.mxu0 0.0
    %196 = vmatprep.subr.mxu0 0.0
    %197 = vmatpush1.msra.mxu0 0.0
    %198 = vmatprep.subr.mxu0 0.0
    %199 = vmatpush1.msra.mxu0 0.0
    %200 = vmatprep.subr.mxu0 0.0
    %201 = vmatpush1.msra.mxu0 0.0
    %202 = vmatprep.subr.mxu0 0.0
    %203 = vmatpush1.msra.mxu0 0.0
    %204 = vmatprep.subr.mxu0 0.0
    %205 = vmatpush1.msra.mxu0 0.0
    %206 = vmatprep.subr.mxu0 0.0
    %207 = vmatpush1.msra.mxu0 0.0
    %208 = vmatprep.subr.mxu0 0.0
    %209 = vmatpush1.msra.mxu0 0.0
    %210 = vmatprep.subr.mxu0 0.0
    %211 = vmatpush1.msra.mxu0 0.0
    %212 = vmatprep.subr.mxu0 0.0
    %213 = vmatpush1.msra.mxu0 0.0
    %214 = vmatprep.subr.mxu0 0.0
    %215 = vmatpush1.msra.mxu0 0.0
    %216 = vmatprep.subr.mxu0 0.0
    %217 = vmatpush1.msra.mxu0 0.0
    %218 = vmatprep.subr.mxu0 0.0
    %219 = vmatpush1.msra.mxu0 0.0
    %220 = vmatprep.subr.mxu0 0.0
    %221 = vmatpush1.msra.mxu0 0.0
    %222 = vmatprep.subr.mxu0 0.0
    %223 = vmatpush1.msra.mxu0 0.0
    %224 = vmatprep.subr.mxu0 0.0
    %225 = vmatpush1.msra.mxu0 0.0
    %226 = vmatprep.subr.mxu0 0.0
    %227 = vmatpush1.msra.mxu0 0.0
    %228 = vmatprep.subr.mxu0 0.0
    %229 = vmatpush1.msra.mxu0 0.0
    %230 = vmatprep.subr.mxu0 0.0
    %231 = vmatpush1.msra.mxu0 0.0
    %232 = vmatprep.mubr.f32.mxu0 0.0
    %233 = vmatmul.mubr.f32.gmra.mrb[0].mxu0 %v166
    %v234 = vpop.f32.mrb[0].mxu0
    %v235 = vadd.f32 %v147, %v234
    %v236 = vpop.f32.mrb[0].mxu0
    %v237 = vadd.f32 %v151, %v236
    %238 = vdwg.mxu0
    %239 = vmatprep.subr.mxu0 %v129
    %240 = vmatpush1.msra.mxu0 %v128
    %241 = vmatprep.subr.mxu0 %v133
    %242 = vmatpush1.msra.mxu0 %v132
    %243 = vmatprep.subr.mxu0 %v137
    %244 = vmatpush1.msra.mxu0 %v136
    %245 = vmatprep.subr.mxu0 %v141
    %246 = vmatpush1.msra.mxu0 %v140
    %247 = vmatprep.subr.mxu0 0.0
    %248 = vmatpush1.msra.mxu0 0.0
    %249 = vmatprep.subr.mxu0 0.0
    %250 = vmatpush1.msra.mxu0 0.0
    %251 = vmatprep.subr.mxu0 0.0
    %252 = vmatpush1.msra.mxu0 0.0
    %253 = vmatprep.subr.mxu0 0.0
    %254 = vmatpush1.msra.mxu0 0.0
    %255 = vmatprep.subr.mxu0 0.0
    %256 = vmatpush1.msra.mxu0 0.0
    %257 = vmatprep.subr.mxu0 0.0
    %258 = vmatpush1.msra.mxu0 0.0
    %259 = vmatprep.subr.mxu0 0.0
    %260 = vmatpush1.msra.mxu0 0.0
    %261 = vmatprep.subr.mxu0 0.0
    %262 = vmatpush1.msra.mxu0 0.0
    %263 = vmatprep.subr.mxu0 0.0
    %264 = vmatpush1.msra.mxu0 0.0
    %265 = vmatprep.subr.mxu0 0.0
    %266 = vmatpush1.msra.mxu0 0.0
    %267 = vmatprep.subr.mxu0 0.0
    %268 = vmatpush1.msra.mxu0 0.0
    %269 = vmatprep.subr.mxu0 0.0
    %270 = vmatpush1.msra.mxu0 0.0
    %271 = vmatprep.subr.mxu0 0.0
    %272 = vmatpush1.msra.mxu0 0.0
    %273 = vmatprep.subr.mxu0 0.0
    %274 = vmatpush1.msra.mxu0 0.0
    %275 = vmatprep.subr.mxu0 0.0
    %276 = vmatpush1.msra.mxu0 0.0
    %277 = vmatprep.subr.mxu0 0.0
    %278 = vmatpush1.msra.mxu0 0.0
    %279 = vmatprep.subr.mxu0 0.0
    %280 = vmatpush1.msra.mxu0 0.0
    %281 = vmatprep.subr.mxu0 0.0
    %282 = vmatpush1.msra.mxu0 0.0
    %283 = vmatprep.subr.mxu0 0.0
    %284 = vmatpush1.msra.mxu0 0.0
    %285 = vmatprep.subr.mxu0 0.0
    %286 = vmatpush1.msra.mxu0 0.0
    %287 = vmatprep.subr.mxu0 0.0
    %288 = vmatpush1.msra.mxu0 0.0
    %289 = vmatprep.subr.mxu0 0.0
    %290 = vmatpush1.msra.mxu0 0.0
    %291 = vmatprep.subr.mxu0 0.0
    %292 = vmatpush1.msra.mxu0 0.0
    %293 = vmatprep.subr.mxu0 0.0
    %294 = vmatpush1.msra.mxu0 0.0
    %295 = vmatprep.subr.mxu0 0.0
    %296 = vmatpush1.msra.mxu0 0.0
    %297 = vmatprep.subr.mxu0 0.0
    %298 = vmatpush1.msra.mxu0 0.0
    %299 = vmatprep.subr.mxu0 0.0
    %300 = vmatpush1.msra.mxu0 0.0
    %301 = vmatprep.subr.mxu0 0.0
    %302 = vmatpush1.msra.mxu0 0.0
    %303 = vmatprep.mubr.f32.mxu0 0.0
    %304 = vmatmul.mubr.f32.gmra.mrb[0].mxu0 %v166
    %v305 = vpop.f32.mrb[0].mxu0
    %v306 = vadd.f32 %v155, %v305
    %v307 = vpop.f32.mrb[0].mxu0
    %v308 = vadd.f32 %v159, %v307
    %309 = vdwg.mxu0
    %v310 = vmax.f32 %v235, 0.0
    %v311 = vmax.f32 %v237, 0.0
    %v312 = vmax.f32 %v306, 0.0
    %v313 = vmax.f32 %v308, 0.0
    %v314 = vlaneseq
    %v315 = vshrl.u32 %v314, 7
    %v316 = vstv %s124
    %v317 = vadd.s32 %v315, %v316
    %v318 = vlaneseq
    %v319 = vand.u32 %v318, 127
    %v320 = vadd.s32 %v319, 128
    %v321 = vadd.s32 %v319, 256
    %v322 = vadd.s32 %v319, 384
    %v323 = vmul.u32 %v317, 2654435761
    %v324 = vmul.u32 %v319, 2246822519
    %v325 = vmul.u32 %v320, 2246822519
    %v326 = vmul.u32 %v321, 2246822519
    %v327 = vmul.u32 %v322, 2246822519
    %v328 = vxor.u32 %v323, %v324
    %v329 = vxor.u32 %v323, %v325
    %v330 = vxor.u32 %v323, %v326
    %v331 = vxor.u32 %v323, %v327
    %s332 = smul.u32 %s123, 3266489917
    %v333 = vstv %s332
    %v334 = vadd.s32 %v328, %v333
    %v335 = vadd.s32 %v329, %v333
    %v336 = vadd.s32 %v330, %v333
    %v337 = vadd.s32 %v331, %v333
    %v338 = vadd.s32 %v334, 257
    %v339 = vadd.s32 %v335, 257
    %v340 = vadd.s32 %v336, 257
    %v341 = vadd.s32 %v337, 257
    %v342 = vshrl.u32 %v338, 16
    %v343 = vshrl.u32 %v339, 16
    %v344 = vshrl.u32 %v340, 16
    %v345 = vshrl.u32 %v341, 16
    %v346 = vxor.u32 %v338, %v342
    %v347 = vxor.u32 %v339, %v343
    %v348 = vxor.u32 %v340, %v344
    %v349 = vxor.u32 %v341, %v345
    %v350 = vmul.u32 %v346, 2146121005
    %v351 = vmul.u32 %v347, 2146121005
    %v352 = vmul.u32 %v348, 2146121005
    %v353 = vmul.u32 %v349, 2146121005
    %v354 = vshrl.u32 %v350, 15
    %v355 = vshrl.u32 %v351, 15
    %v356 = vshrl.u32 %v352, 15
    %v357 = vshrl.u32 %v353, 15
    %v358 = vxor.u32 %v350, %v354
    %v359 = vxor.u32 %v351, %v355
    %v360 = vxor.u32 %v352, %v356
    %v361 = vxor.u32 %v353, %v357
    %v362 = vmul.u32 %v358, 2221713035
    %v363 = vmul.u32 %v359, 2221713035
    %v364 = vmul.u32 %v360, 2221713035
    %v365 = vmul.u32 %v361, 2221713035
    %v366 = vshrl.u32 %v362, 16
    %v367 = vshrl.u32 %v363, 16
    %v368 = vshrl.u32 %v364, 16
    %v369 = vshrl.u32 %v365, 16
    %v370 = vxor.u32 %v362, %v366
    %v371 = vxor.u32 %v363, %v367
    %v372 = vxor.u32 %v364, %v368
    %v373 = vxor.u32 %v365, %v369
    %vm374 = vcmp.ge.u32.totalorder %v370, 858993459
    %vm375 = vcmp.ge.u32.totalorder %v371, 858993459
    %vm376 = vcmp.ge.u32.totalorder %v372, 858993459
    %vm377 = vcmp.ge.u32.totalorder %v373, 858993459
    %v378 = vmul.f32 %v310, 1.25
    %v379 = vmul.f32 %v311, 1.25
    %v380 = vmul.f32 %v312, 1.25
    %v381 = vmul.f32 %v313, 1.25
    %v382 = vsel %vm374, %v378, 0.0
    %v383 = vsel %vm375, %v379, 0.0
    %v384 = vsel %vm376, %v380, 0.0
    %v385 = vsel %vm377, %v381, 0.0
    %v386 = vld [vmem:[#allocation8] sm:$0xff]
    %v387 = vld [vmem:[#allocation8 + $0x8] sm:$0xff]
    %v388 = vld [vmem:[#allocation8 + $0x10] sm:$0xff]
    %v389 = vld [vmem:[#allocation8 + $0x18] sm:$0xff]
    %v390 = vld [vmem:[#allocation8 + $0x20] sm:$0xff]
    %v391 = vld [vmem:[#allocation8 + $0x28] sm:$0xff]
    %v392 = vld [vmem:[#allocation8 + $0x30] sm:$0xff]
    %v393 = vld [vmem:[#allocation8 + $0x38] sm:$0xff]
    %v394 = vld [vmem:[#allocation8 + $0x40] sm:$0xff]
    %v395 = vld [vmem:[#allocation8 + $0x48] sm:$0xff]
    %v396 = vld [vmem:[#allocation8 + $0x50] sm:$0xff]
    %v397 = vld [vmem:[#allocation8 + $0x58] sm:$0xff]
    %v398 = vld [vmem:[#allocation8 + $0x60] sm:$0xff]
    %v399 = vld [vmem:[#allocation8 + $0x68] sm:$0xff]
    %v400 = vld [vmem:[#allocation8 + $0x70] sm:$0xff]
    %v401 = vld [vmem:[#allocation8 + $0x78] sm:$0xff]
    %v402 = vld [vmem:[#allocation8 + $0x80] sm:$0xff]
    %v403 = vld [vmem:[#allocation8 + $0x88] sm:$0xff]
    %v404 = vld [vmem:[#allocation8 + $0x90] sm:$0xff]
    %v405 = vld [vmem:[#allocation8 + $0x98] sm:$0xff]
    %v406 = vld [vmem:[#allocation8 + $0xa0] sm:$0xff]
    %v407 = vld [vmem:[#allocation8 + $0xa8] sm:$0xff]
    %v408 = vld [vmem:[#allocation8 + $0xb0] sm:$0xff]
    %v409 = vld [vmem:[#allocation8 + $0xb8] sm:$0xff]
    %v410 = vld [vmem:[#allocation8 + $0xc0] sm:$0xff]
    %v411 = vld [vmem:[#allocation8 + $0xc8] sm:$0xff]
    %v412 = vld [vmem:[#allocation8 + $0xd0] sm:$0xff]
    %v413 = vld [vmem:[#allocation8 + $0xd8] sm:$0xff]
    %v414 = vld [vmem:[#allocation8 + $0xe0] sm:$0xff]
    %v415 = vld [vmem:[#allocation8 + $0xe8] sm:$0xff]
    %v416 = vld [vmem:[#allocation8 + $0xf0] sm:$0xff]
    %v417 = vld [vmem:[#allocation8 + $0xf8] sm:$0xff]
    %v418 = vld [vmem:[#allocation8 + $0x100] sm:$0xff]
    %v419 = vld [vmem:[#allocation8 + $0x108] sm:$0xff]
    %v420 = vld [vmem:[#allocation8 + $0x110] sm:$0xff]
    %v421 = vld [vmem:[#allocation8 + $0x118] sm:$0xff]
    %v422 = vld [vmem:[#allocation8 + $0x120] sm:$0xff]
    %v423 = vld [vmem:[#allocation8 + $0x128] sm:$0xff]
    %v424 = vld [vmem:[#allocation8 + $0x130] sm:$0xff]
    %v425 = vld [vmem:[#allocation8 + $0x138] sm:$0xff]
    %v426 = vld [vmem:[#allocation8 + $0x140] sm:$0xff]
    %v427 = vld [vmem:[#allocation8 + $0x148] sm:$0xff]
    %v428 = vld [vmem:[#allocation8 + $0x150] sm:$0xff]
    %v429 = vld [vmem:[#allocation8 + $0x158] sm:$0xff]
    %v430 = vld [vmem:[#allocation8 + $0x160] sm:$0xff]
    %v431 = vld [vmem:[#allocation8 + $0x168] sm:$0xff]
    %v432 = vld [vmem:[#allocation8 + $0x170] sm:$0xff]
    %v433 = vld [vmem:[#allocation8 + $0x178] sm:$0xff]
    %v434 = vld [vmem:[#allocation8 + $0x180] sm:$0xff]
    %v435 = vld [vmem:[#allocation8 + $0x188] sm:$0xff]
    %v436 = vld [vmem:[#allocation8 + $0x190] sm:$0xff]
    %v437 = vld [vmem:[#allocation8 + $0x198] sm:$0xff]
    %v438 = vld [vmem:[#allocation8 + $0x1a0] sm:$0xff]
    %v439 = vld [vmem:[#allocation8 + $0x1a8] sm:$0xff]
    %v440 = vld [vmem:[#allocation8 + $0x1b0] sm:$0xff]
    %v441 = vld [vmem:[#allocation8 + $0x1b8] sm:$0xff]
    %v442 = vld [vmem:[#allocation8 + $0x1c0] sm:$0xff]
    %v443 = vld [vmem:[#allocation8 + $0x1c8] sm:$0xff]
    %v444 = vld [vmem:[#allocation8 + $0x1d0] sm:$0xff]
    %v445 = vld [vmem:[#allocation8 + $0x1d8] sm:$0xff]
    %v446 = vld [vmem:[#allocation8 + $0x1e0] sm:$0xff]
    %v447 = vld [vmem:[#allocation8 + $0x1e8] sm:$0xff]
    %v448 = vld [vmem:[#allocation8 + $0x1f0] sm:$0xff]
    %v449 = vld [vmem:[#allocation8 + $0x1f8] sm:$0xff]
    %v450 = vld [vmem:[#allocation8 + $0x200] sm:$0xff]
    %v451 = vld [vmem:[#allocation8 + $0x208] sm:$0xff]
    %v452 = vld [vmem:[#allocation8 + $0x210] sm:$0xff]
    %v453 = vld [vmem:[#allocation8 + $0x218] sm:$0xff]
    %v454 = vld [vmem:[#allocation8 + $0x220] sm:$0xff]
    %v455 = vld [vmem:[#allocation8 + $0x228] sm:$0xff]
    %v456 = vld [vmem:[#allocation8 + $0x230] sm:$0xff]
    %v457 = vld [vmem:[#allocation8 + $0x238] sm:$0xff]
    %v458 = vld [vmem:[#allocation8 + $0x240] sm:$0xff]
    %v459 = vld [vmem:[#allocation8 + $0x248] sm:$0xff]
    %v460 = vld [vmem:[#allocation8 + $0x250] sm:$0xff]
    %v461 = vld [vmem:[#allocation8 + $0x258] sm:$0xff]
    %v462 = vld [vmem:[#allocation8 + $0x260] sm:$0xff]
    %v463 = vld [vmem:[#allocation8 + $0x268] sm:$0xff]
    %v464 = vld [vmem:[#allocation8 + $0x270] sm:$0xff]
    %v465 = vld [vmem:[#allocation8 + $0x278] sm:$0xff]
    %v466 = vld [vmem:[#allocation8 + $0x280] sm:$0xff]
    %v467 = vld [vmem:[#allocation8 + $0x288] sm:$0xff]
    %v468 = vld [vmem:[#allocation8 + $0x290] sm:$0xff]
    %v469 = vld [vmem:[#allocation8 + $0x298] sm:$0xff]
    %v470 = vld [vmem:[#allocation8 + $0x2a0] sm:$0xff]
    %v471 = vld [vmem:[#allocation8 + $0x2a8] sm:$0xff]
    %v472 = vld [vmem:[#allocation8 + $0x2b0] sm:$0xff]
    %v473 = vld [vmem:[#allocation8 + $0x2b8] sm:$0xff]
    %v474 = vld [vmem:[#allocation8 + $0x2c0] sm:$0xff]
    %v475 = vld [vmem:[#allocation8 + $0x2c8] sm:$0xff]
    %v476 = vld [vmem:[#allocation8 + $0x2d0] sm:$0xff]
    %v477 = vld [vmem:[#allocation8 + $0x2d8] sm:$0xff]
    %v478 = vld [vmem:[#allocation8 + $0x2e0] sm:$0xff]
    %v479 = vld [vmem:[#allocation8 + $0x2e8] sm:$0xff]
    %v480 = vld [vmem:[#allocation8 + $0x2f0] sm:$0xff]
    %v481 = vld [vmem:[#allocation8 + $0x2f8] sm:$0xff]
    %v482 = vld [vmem:[#allocation8 + $0x300] sm:$0xff]
    %v483 = vld [vmem:[#allocation8 + $0x308] sm:$0xff]
    %v484 = vld [vmem:[#allocation8 + $0x310] sm:$0xff]
    %v485 = vld [vmem:[#allocation8 + $0x318] sm:$0xff]
    %v486 = vld [vmem:[#allocation8 + $0x320] sm:$0xff]
    %v487 = vld [vmem:[#allocation8 + $0x328] sm:$0xff]
    %v488 = vld [vmem:[#allocation8 + $0x330] sm:$0xff]
    %v489 = vld [vmem:[#allocation8 + $0x338] sm:$0xff]
    %v490 = vld [vmem:[#allocation8 + $0x340] sm:$0xff]
    %v491 = vld [vmem:[#allocation8 + $0x348] sm:$0xff]
    %v492 = vld [vmem:[#allocation8 + $0x350] sm:$0xff]
    %v493 = vld [vmem:[#allocation8 + $0x358] sm:$0xff]
    %v494 = vld [vmem:[#allocation8 + $0x360] sm:$0xff]
    %v495 = vld [vmem:[#allocation8 + $0x368] sm:$0xff]
    %v496 = vld [vmem:[#allocation8 + $0x370] sm:$0xff]
    %v497 = vld [vmem:[#allocation8 + $0x378] sm:$0xff]
    %v498 = vld [vmem:[#allocation8 + $0x380] sm:$0xff]
    %v499 = vld [vmem:[#allocation8 + $0x388] sm:$0xff]
    %v500 = vld [vmem:[#allocation8 + $0x390] sm:$0xff]
    %v501 = vld [vmem:[#allocation8 + $0x398] sm:$0xff]
    %v502 = vld [vmem:[#allocation8 + $0x3a0] sm:$0xff]
    %v503 = vld [vmem:[#allocation8 + $0x3a8] sm:$0xff]
    %v504 = vld [vmem:[#allocation8 + $0x3b0] sm:$0xff]
    %v505 = vld [vmem:[#allocation8 + $0x3b8] sm:$0xff]
    %v506 = vld [vmem:[#allocation8 + $0x3c0] sm:$0xff]
    %v507 = vld [vmem:[#allocation8 + $0x3c8] sm:$0xff]
    %v508 = vld [vmem:[#allocation8 + $0x3d0] sm:$0xff]
    %v509 = vld [vmem:[#allocation8 + $0x3d8] sm:$0xff]
    %v510 = vld [vmem:[#allocation8 + $0x3e0] sm:$0xff]
    %v511 = vld [vmem:[#allocation8 + $0x3e8] sm:$0xff]
    %v512 = vld [vmem:[#allocation8 + $0x3f0] sm:$0xff]
    %v513 = vld [vmem:[#allocation8 + $0x3f8] sm:$0xff]
    %v514 = vld [vmem:[#allocation8 + $0x400] sm:$0xff]
    %v515 = vld [vmem:[#allocation8 + $0x408] sm:$0xff]
    %v516 = vld [vmem:[#allocation8 + $0x410] sm:$0xff]
    %v517 = vld [vmem:[#allocation8 + $0x418] sm:$0xff]
    %v518 = vld [vmem:[#allocation8 + $0x420] sm:$0xff]
    %v519 = vld [vmem:[#allocation8 + $0x428] sm:$0xff]
    %v520 = vld [vmem:[#allocation8 + $0x430] sm:$0xff]
    %v521 = vld [vmem:[#allocation8 + $0x438] sm:$0xff]
    %v522 = vld [vmem:[#allocation8 + $0x440] sm:$0xff]
    %v523 = vld [vmem:[#allocation8 + $0x448] sm:$0xff]
    %v524 = vld [vmem:[#allocation8 + $0x450] sm:$0xff]
    %v525 = vld [vmem:[#allocation8 + $0x458] sm:$0xff]
    %v526 = vld [vmem:[#allocation8 + $0x460] sm:$0xff]
    %v527 = vld [vmem:[#allocation8 + $0x468] sm:$0xff]
    %v528 = vld [vmem:[#allocation8 + $0x470] sm:$0xff]
    %v529 = vld [vmem:[#allocation8 + $0x478] sm:$0xff]
    %v530 = vld [vmem:[#allocation8 + $0x480] sm:$0xff]
    %v531 = vld [vmem:[#allocation8 + $0x488] sm:$0xff]
    %v532 = vld [vmem:[#allocation8 + $0x490] sm:$0xff]
    %v533 = vld [vmem:[#allocation8 + $0x498] sm:$0xff]
    %v534 = vld [vmem:[#allocation8 + $0x4a0] sm:$0xff]
    %v535 = vld [vmem:[#allocation8 + $0x4a8] sm:$0xff]
    %v536 = vld [vmem:[#allocation8 + $0x4b0] sm:$0xff]
    %v537 = vld [vmem:[#allocation8 + $0x4b8] sm:$0xff]
    %v538 = vld [vmem:[#allocation8 + $0x4c0] sm:$0xff]
    %v539 = vld [vmem:[#allocation8 + $0x4c8] sm:$0xff]
    %v540 = vld [vmem:[#allocation8 + $0x4d0] sm:$0xff]
    %v541 = vld [vmem:[#allocation8 + $0x4d8] sm:$0xff]
    %v542 = vld [vmem:[#allocation8 + $0x4e0] sm:$0xff]
    %v543 = vld [vmem:[#allocation8 + $0x4e8] sm:$0xff]
    %v544 = vld [vmem:[#allocation8 + $0x4f0] sm:$0xff]
    %v545 = vld [vmem:[#allocation8 + $0x4f8] sm:$0xff]
    %v546 = vld [vmem:[#allocation8 + $0x500] sm:$0xff]
    %v547 = vld [vmem:[#allocation8 + $0x508] sm:$0xff]
    %v548 = vld [vmem:[#allocation8 + $0x510] sm:$0xff]
    %v549 = vld [vmem:[#allocation8 + $0x518] sm:$0xff]
    %v550 = vld [vmem:[#allocation8 + $0x520] sm:$0xff]
    %v551 = vld [vmem:[#allocation8 + $0x528] sm:$0xff]
    %v552 = vld [vmem:[#allocation8 + $0x530] sm:$0xff]
    %v553 = vld [vmem:[#allocation8 + $0x538] sm:$0xff]
    %v554 = vld [vmem:[#allocation8 + $0x540] sm:$0xff]
    %v555 = vld [vmem:[#allocation8 + $0x548] sm:$0xff]
    %v556 = vld [vmem:[#allocation8 + $0x550] sm:$0xff]
    %v557 = vld [vmem:[#allocation8 + $0x558] sm:$0xff]
    %v558 = vld [vmem:[#allocation8 + $0x560] sm:$0xff]
    %v559 = vld [vmem:[#allocation8 + $0x568] sm:$0xff]
    %v560 = vld [vmem:[#allocation8 + $0x570] sm:$0xff]
    %v561 = vld [vmem:[#allocation8 + $0x578] sm:$0xff]
    %v562 = vld [vmem:[#allocation8 + $0x580] sm:$0xff]
    %v563 = vld [vmem:[#allocation8 + $0x588] sm:$0xff]
    %v564 = vld [vmem:[#allocation8 + $0x590] sm:$0xff]
    %v565 = vld [vmem:[#allocation8 + $0x598] sm:$0xff]
    %v566 = vld [vmem:[#allocation8 + $0x5a0] sm:$0xff]
    %v567 = vld [vmem:[#allocation8 + $0x5a8] sm:$0xff]
    %v568 = vld [vmem:[#allocation8 + $0x5b0] sm:$0xff]
    %v569 = vld [vmem:[#allocation8 + $0x5b8] sm:$0xff]
    %v570 = vld [vmem:[#allocation8 + $0x5c0] sm:$0xff]
    %v571 = vld [vmem:[#allocation8 + $0x5c8] sm:$0xff]
    %v572 = vld [vmem:[#allocation8 + $0x5d0] sm:$0xff]
    %v573 = vld [vmem:[#allocation8 + $0x5d8] sm:$0xff]
    %v574 = vld [vmem:[#allocation8 + $0x5e0] sm:$0xff]
    %v575 = vld [vmem:[#allocation8 + $0x5e8] sm:$0xff]
    %v576 = vld [vmem:[#allocation8 + $0x5f0] sm:$0xff]
    %v577 = vld [vmem:[#allocation8 + $0x5f8] sm:$0xff]
    %v578 = vld [vmem:[#allocation8 + $0x600] sm:$0xff]
    %v579 = vld [vmem:[#allocation8 + $0x608] sm:$0xff]
    %v580 = vld [vmem:[#allocation8 + $0x610] sm:$0xff]
    %v581 = vld [vmem:[#allocation8 + $0x618] sm:$0xff]
    %v582 = vld [vmem:[#allocation8 + $0x620] sm:$0xff]
    %v583 = vld [vmem:[#allocation8 + $0x628] sm:$0xff]
    %v584 = vld [vmem:[#allocation8 + $0x630] sm:$0xff]
    %v585 = vld [vmem:[#allocation8 + $0x638] sm:$0xff]
    %v586 = vld [vmem:[#allocation8 + $0x640] sm:$0xff]
    %v587 = vld [vmem:[#allocation8 + $0x648] sm:$0xff]
    %v588 = vld [vmem:[#allocation8 + $0x650] sm:$0xff]
    %v589 = vld [vmem:[#allocation8 + $0x658] sm:$0xff]
    %v590 = vld [vmem:[#allocation8 + $0x660] sm:$0xff]
    %v591 = vld [vmem:[#allocation8 + $0x668] sm:$0xff]
    %v592 = vld [vmem:[#allocation8 + $0x670] sm:$0xff]
    %v593 = vld [vmem:[#allocation8 + $0x678] sm:$0xff]
    %v594 = vld [vmem:[#allocation8 + $0x680] sm:$0xff]
    %v595 = vld [vmem:[#allocation8 + $0x688] sm:$0xff]
    %v596 = vld [vmem:[#allocation8 + $0x690] sm:$0xff]
    %v597 = vld [vmem:[#allocation8 + $0x698] sm:$0xff]
    %v598 = vld [vmem:[#allocation8 + $0x6a0] sm:$0xff]
    %v599 = vld [vmem:[#allocation8 + $0x6a8] sm:$0xff]
    %v600 = vld [vmem:[#allocation8 + $0x6b0] sm:$0xff]
    %v601 = vld [vmem:[#allocation8 + $0x6b8] sm:$0xff]
    %v602 = vld [vmem:[#allocation8 + $0x6c0] sm:$0xff]
    %v603 = vld [vmem:[#allocation8 + $0x6c8] sm:$0xff]
    %v604 = vld [vmem:[#allocation8 + $0x6d0] sm:$0xff]
    %v605 = vld [vmem:[#allocation8 + $0x6d8] sm:$0xff]
    %v606 = vld [vmem:[#allocation8 + $0x6e0] sm:$0xff]
    %v607 = vld [vmem:[#allocation8 + $0x6e8] sm:$0xff]
    %v608 = vld [vmem:[#allocation8 + $0x6f0] sm:$0xff]
    %v609 = vld [vmem:[#allocation8 + $0x6f8] sm:$0xff]
    %v610 = vld [vmem:[#allocation8 + $0x700] sm:$0xff]
    %v611 = vld [vmem:[#allocation8 + $0x708] sm:$0xff]
    %v612 = vld [vmem:[#allocation8 + $0x710] sm:$0xff]
    %v613 = vld [vmem:[#allocation8 + $0x718] sm:$0xff]
    %v614 = vld [vmem:[#allocation8 + $0x720] sm:$0xff]
    %v615 = vld [vmem:[#allocation8 + $0x728] sm:$0xff]
    %v616 = vld [vmem:[#allocation8 + $0x730] sm:$0xff]
    %v617 = vld [vmem:[#allocation8 + $0x738] sm:$0xff]
    %v618 = vld [vmem:[#allocation8 + $0x740] sm:$0xff]
    %v619 = vld [vmem:[#allocation8 + $0x748] sm:$0xff]
    %v620 = vld [vmem:[#allocation8 + $0x750] sm:$0xff]
    %v621 = vld [vmem:[#allocation8 + $0x758] sm:$0xff]
    %v622 = vld [vmem:[#allocation8 + $0x760] sm:$0xff]
    %v623 = vld [vmem:[#allocation8 + $0x768] sm:$0xff]
    %v624 = vld [vmem:[#allocation8 + $0x770] sm:$0xff]
    %v625 = vld [vmem:[#allocation8 + $0x778] sm:$0xff]
    %v626 = vld [vmem:[#allocation8 + $0x780] sm:$0xff]
    %v627 = vld [vmem:[#allocation8 + $0x788] sm:$0xff]
    %v628 = vld [vmem:[#allocation8 + $0x790] sm:$0xff]
    %v629 = vld [vmem:[#allocation8 + $0x798] sm:$0xff]
    %v630 = vld [vmem:[#allocation8 + $0x7a0] sm:$0xff]
    %v631 = vld [vmem:[#allocation8 + $0x7a8] sm:$0xff]
    %v632 = vld [vmem:[#allocation8 + $0x7b0] sm:$0xff]
    %v633 = vld [vmem:[#allocation8 + $0x7b8] sm:$0xff]
    %v634 = vld [vmem:[#allocation8 + $0x7c0] sm:$0xff]
    %v635 = vld [vmem:[#allocation8 + $0x7c8] sm:$0xff]
    %v636 = vld [vmem:[#allocation8 + $0x7d0] sm:$0xff]
    %v637 = vld [vmem:[#allocation8 + $0x7d8] sm:$0xff]
    %v638 = vld [vmem:[#allocation8 + $0x7e0] sm:$0xff]
    %v639 = vld [vmem:[#allocation8 + $0x7e8] sm:$0xff]
    %v640 = vld [vmem:[#allocation8 + $0x7f0] sm:$0xff]
    %v641 = vld [vmem:[#allocation8 + $0x7f8] sm:$0xff]
    %v642 = vld [vmem:[%s5] sm:$0xf]
    %v644 = vlaneseq
    %v645 = vshrl.u32 %v644, 7
    %v646 = vsub.s32 0, %v645
    %v647 = vrot.slane %v642, %v646
    %v648 = vlaneseq
    %v649 = vshrl.u32 %v648, 7
    %v650 = vsub.s32 1, %v649
    %v651 = vrot.slane %v642, %v650
    %v652 = vlaneseq
    %v653 = vshrl.u32 %v652, 7
    %v654 = vsub.s32 2, %v653
    %v655 = vrot.slane %v642, %v654
    %v656 = vlaneseq
    %v657 = vshrl.u32 %v656, 7
    %v658 = vsub.s32 3, %v657
    %v659 = vrot.slane %v642, %v658
    %664 = vmatprep.subr.mxu0 %v387
    %665 = vmatpush1.msra.mxu0 %v386
    %666 = vmatprep.subr.mxu0 %v391
    %667 = vmatpush1.msra.mxu0 %v390
    %668 = vmatprep.subr.mxu0 %v395
    %669 = vmatpush1.msra.mxu0 %v394
    %670 = vmatprep.subr.mxu0 %v399
    %671 = vmatpush1.msra.mxu0 %v398
    %672 = vmatprep.subr.mxu0 %v403
    %673 = vmatpush1.msra.mxu0 %v402
    %674 = vmatprep.subr.mxu0 %v407
    %675 = vmatpush1.msra.mxu0 %v406
    %676 = vmatprep.subr.mxu0 %v411
    %677 = vmatpush1.msra.mxu0 %v410
    %678 = vmatprep.subr.mxu0 %v415
    %679 = vmatpush1.msra.mxu0 %v414
    %680 = vmatprep.subr.mxu0 %v419
    %681 = vmatpush1.msra.mxu0 %v418
    %682 = vmatprep.subr.mxu0 %v423
    %683 = vmatpush1.msra.mxu0 %v422
    %684 = vmatprep.subr.mxu0 %v427
    %685 = vmatpush1.msra.mxu0 %v426
    %686 = vmatprep.subr.mxu0 %v431
    %687 = vmatpush1.msra.mxu0 %v430
    %688 = vmatprep.subr.mxu0 %v435
    %689 = vmatpush1.msra.mxu0 %v434
    %690 = vmatprep.subr.mxu0 %v439
    %691 = vmatpush1.msra.mxu0 %v438
    %692 = vmatprep.subr.mxu0 %v443
    %693 = vmatpush1.msra.mxu0 %v442
    %694 = vmatprep.subr.mxu0 %v447
    %695 = vmatpush1.msra.mxu0 %v446
    %696 = vmatprep.subr.mxu0 %v451
    %697 = vmatpush1.msra.mxu0 %v450
    %698 = vmatprep.subr.mxu0 %v455
    %699 = vmatpush1.msra.mxu0 %v454
    %700 = vmatprep.subr.mxu0 %v459
    %701 = vmatpush1.msra.mxu0 %v458
    %702 = vmatprep.subr.mxu0 %v463
    %703 = vmatpush1.msra.mxu0 %v462
    %704 = vmatprep.subr.mxu0 %v467
    %705 = vmatpush1.msra.mxu0 %v466
    %706 = vmatprep.subr.mxu0 %v471
    %707 = vmatpush1.msra.mxu0 %v470
    %708 = vmatprep.subr.mxu0 %v475
    %709 = vmatpush1.msra.mxu0 %v474
    %710 = vmatprep.subr.mxu0 %v479
    %711 = vmatpush1.msra.mxu0 %v478
    %712 = vmatprep.subr.mxu0 %v483
    %713 = vmatpush1.msra.mxu0 %v482
    %714 = vmatprep.subr.mxu0 %v487
    %715 = vmatpush1.msra.mxu0 %v486
    %716 = vmatprep.subr.mxu0 %v491
    %717 = vmatpush1.msra.mxu0 %v490
    %718 = vmatprep.subr.mxu0 %v495
    %719 = vmatpush1.msra.mxu0 %v494
    %720 = vmatprep.subr.mxu0 %v499
    %721 = vmatpush1.msra.mxu0 %v498
    %722 = vmatprep.subr.mxu0 %v503
    %723 = vmatpush1.msra.mxu0 %v502
    %724 = vmatprep.subr.mxu0 %v507
    %725 = vmatpush1.msra.mxu0 %v506
    %726 = vmatprep.subr.mxu0 %v511
    %727 = vmatpush1.msra.mxu0 %v510
    %728 = vmatprep.mubr.f32.mxu0 %v383
    %729 = vmatmul.mubr.f32.gmra.mrb[0].mxu0 %v382
    %v730 = vpop.f32.mrb[0].mxu0
    %v731 = vadd.f32 %v647, %v730
    %v732 = vpop.f32.mrb[0].mxu0
    %v733 = vadd.f32 %v651, %v732
    %734 = vdwg.mxu0
    %735 = vmatprep.subr.mxu0 %v515
    %736 = vmatpush1.msra.mxu0 %v514
    %737 = vmatprep.subr.mxu0 %v519
    %738 = vmatpush1.msra.mxu0 %v518
    %739 = vmatprep.subr.mxu0 %v523
    %740 = vmatpush1.msra.mxu0 %v522
    %741 = vmatprep.subr.mxu0 %v527
    %742 = vmatpush1.msra.mxu0 %v526
    %743 = vmatprep.subr.mxu0 %v531
    %744 = vmatpush1.msra.mxu0 %v530
    %745 = vmatprep.subr.mxu0 %v535
    %746 = vmatpush1.msra.mxu0 %v534
    %747 = vmatprep.subr.mxu0 %v539
    %748 = vmatpush1.msra.mxu0 %v538
    %749 = vmatprep.subr.mxu0 %v543
    %750 = vmatpush1.msra.mxu0 %v542
    %751 = vmatprep.subr.mxu0 %v547
    %752 = vmatpush1.msra.mxu0 %v546
    %753 = vmatprep.subr.mxu0 %v551
    %754 = vmatpush1.msra.mxu0 %v550
    %755 = vmatprep.subr.mxu0 %v555
    %756 = vmatpush1.msra.mxu0 %v554
    %757 = vmatprep.subr.mxu0 %v559
    %758 = vmatpush1.msra.mxu0 %v558
    %759 = vmatprep.subr.mxu0 %v563
    %760 = vmatpush1.msra.mxu0 %v562
    %761 = vmatprep.subr.mxu0 %v567
    %762 = vmatpush1.msra.mxu0 %v566
    %763 = vmatprep.subr.mxu0 %v571
    %764 = vmatpush1.msra.mxu0 %v570
    %765 = vmatprep.subr.mxu0 %v575
    %766 = vmatpush1.msra.mxu0 %v574
    %767 = vmatprep.subr.mxu0 %v579
    %768 = vmatpush1.msra.mxu0 %v578
    %769 = vmatprep.subr.mxu0 %v583
    %770 = vmatpush1.msra.mxu0 %v582
    %771 = vmatprep.subr.mxu0 %v587
    %772 = vmatpush1.msra.mxu0 %v586
    %773 = vmatprep.subr.mxu0 %v591
    %774 = vmatpush1.msra.mxu0 %v590
    %775 = vmatprep.subr.mxu0 %v595
    %776 = vmatpush1.msra.mxu0 %v594
    %777 = vmatprep.subr.mxu0 %v599
    %778 = vmatpush1.msra.mxu0 %v598
    %779 = vmatprep.subr.mxu0 %v603
    %780 = vmatpush1.msra.mxu0 %v602
    %781 = vmatprep.subr.mxu0 %v607
    %782 = vmatpush1.msra.mxu0 %v606
    %783 = vmatprep.subr.mxu0 %v611
    %784 = vmatpush1.msra.mxu0 %v610
    %785 = vmatprep.subr.mxu0 %v615
    %786 = vmatpush1.msra.mxu0 %v614
    %787 = vmatprep.subr.mxu0 %v619
    %788 = vmatpush1.msra.mxu0 %v618
    %789 = vmatprep.subr.mxu0 %v623
    %790 = vmatpush1.msra.mxu0 %v622
    %791 = vmatprep.subr.mxu0 %v627
    %792 = vmatpush1.msra.mxu0 %v626
    %793 = vmatprep.subr.mxu0 %v631
    %794 = vmatpush1.msra.mxu0 %v630
    %795 = vmatprep.subr.mxu0 %v635
    %796 = vmatpush1.msra.mxu0 %v634
    %797 = vmatprep.subr.mxu0 %v639
    %798 = vmatpush1.msra.mxu0 %v638
    %799 = vmatprep.mubr.f32.mxu0 %v385
    %800 = vmatmul.mubr.f32.gmra.mrb[0].mxu0 %v384
    %v801 = vpop.f32.mrb[0].mxu0
    %v802 = vadd.f32 %v731, %v801
    %v803 = vpop.f32.mrb[0].mxu0
    %v804 = vadd.f32 %v733, %v803
    %805 = vdwg.mxu0
    %806 = vmatprep.subr.mxu0 %v389
    %807 = vmatpush1.msra.mxu0 %v388
    %808 = vmatprep.subr.mxu0 %v393
    %809 = vmatpush1.msra.mxu0 %v392
    %810 = vmatprep.subr.mxu0 %v397
    %811 = vmatpush1.msra.mxu0 %v396
    %812 = vmatprep.subr.mxu0 %v401
    %813 = vmatpush1.msra.mxu0 %v400
    %814 = vmatprep.subr.mxu0 %v405
    %815 = vmatpush1.msra.mxu0 %v404
    %816 = vmatprep.subr.mxu0 %v409
    %817 = vmatpush1.msra.mxu0 %v408
    %818 = vmatprep.subr.mxu0 %v413
    %819 = vmatpush1.msra.mxu0 %v412
    %820 = vmatprep.subr.mxu0 %v417
    %821 = vmatpush1.msra.mxu0 %v416
    %822 = vmatprep.subr.mxu0 %v421
    %823 = vmatpush1.msra.mxu0 %v420
    %824 = vmatprep.subr.mxu0 %v425
    %825 = vmatpush1.msra.mxu0 %v424
    %826 = vmatprep.subr.mxu0 %v429
    %827 = vmatpush1.msra.mxu0 %v428
    %828 = vmatprep.subr.mxu0 %v433
    %829 = vmatpush1.msra.mxu0 %v432
    %830 = vmatprep.subr.mxu0 %v437
    %831 = vmatpush1.msra.mxu0 %v436
    %832 = vmatprep.subr.mxu0 %v441
    %833 = vmatpush1.msra.mxu0 %v440
    %834 = vmatprep.subr.mxu0 %v445
    %835 = vmatpush1.msra.mxu0 %v444
    %836 = vmatprep.subr.mxu0 %v449
    %837 = vmatpush1.msra.mxu0 %v448
    %838 = vmatprep.subr.mxu0 %v453
    %839 = vmatpush1.msra.mxu0 %v452
    %840 = vmatprep.subr.mxu0 %v457
    %841 = vmatpush1.msra.mxu0 %v456
    %842 = vmatprep.subr.mxu0 %v461
    %843 = vmatpush1.msra.mxu0 %v460
    %844 = vmatprep.subr.mxu0 %v465
    %845 = vmatpush1.msra.mxu0 %v464
    %846 = vmatprep.subr.mxu0 %v469
    %847 = vmatpush1.msra.mxu0 %v468
    %848 = vmatprep.subr.mxu0 %v473
    %849 = vmatpush1.msra.mxu0 %v472
    %850 = vmatprep.subr.mxu0 %v477
    %851 = vmatpush1.msra.mxu0 %v476
    %852 = vmatprep.subr.mxu0 %v481
    %853 = vmatpush1.msra.mxu0 %v480
    %854 = vmatprep.subr.mxu0 %v485
    %855 = vmatpush1.msra.mxu0 %v484
    %856 = vmatprep.subr.mxu0 %v489
    %857 = vmatpush1.msra.mxu0 %v488
    %858 = vmatprep.subr.mxu0 %v493
    %859 = vmatpush1.msra.mxu0 %v492
    %860 = vmatprep.subr.mxu0 %v497
    %861 = vmatpush1.msra.mxu0 %v496
    %862 = vmatprep.subr.mxu0 %v501
    %863 = vmatpush1.msra.mxu0 %v500
    %864 = vmatprep.subr.mxu0 %v505
    %865 = vmatpush1.msra.mxu0 %v504
    %866 = vmatprep.subr.mxu0 %v509
    %867 = vmatpush1.msra.mxu0 %v508
    %868 = vmatprep.subr.mxu0 %v513
    %869 = vmatpush1.msra.mxu0 %v512
    %870 = vmatprep.mubr.f32.mxu0 %v383
    %871 = vmatmul.mubr.f32.gmra.mrb[0].mxu0 %v382
    %v872 = vpop.f32.mrb[0].mxu0
    %v873 = vadd.f32 %v655, %v872
    %v874 = vpop.f32.mrb[0].mxu0
    %v875 = vadd.f32 %v659, %v874
    %876 = vdwg.mxu0
    %877 = vmatprep.subr.mxu0 %v517
    %878 = vmatpush1.msra.mxu0 %v516
    %879 = vmatprep.subr.mxu0 %v521
    %880 = vmatpush1.msra.mxu0 %v520
    %881 = vmatprep.subr.mxu0 %v525
    %882 = vmatpush1.msra.mxu0 %v524
    %883 = vmatprep.subr.mxu0 %v529
    %884 = vmatpush1.msra.mxu0 %v528
    %885 = vmatprep.subr.mxu0 %v533
    %886 = vmatpush1.msra.mxu0 %v532
    %887 = vmatprep.subr.mxu0 %v537
    %888 = vmatpush1.msra.mxu0 %v536
    %889 = vmatprep.subr.mxu0 %v541
    %890 = vmatpush1.msra.mxu0 %v540
    %891 = vmatprep.subr.mxu0 %v545
    %892 = vmatpush1.msra.mxu0 %v544
    %893 = vmatprep.subr.mxu0 %v549
    %894 = vmatpush1.msra.mxu0 %v548
    %895 = vmatprep.subr.mxu0 %v553
    %896 = vmatpush1.msra.mxu0 %v552
    %897 = vmatprep.subr.mxu0 %v557
    %898 = vmatpush1.msra.mxu0 %v556
    %899 = vmatprep.subr.mxu0 %v561
    %900 = vmatpush1.msra.mxu0 %v560
    %901 = vmatprep.subr.mxu0 %v565
    %902 = vmatpush1.msra.mxu0 %v564
    %903 = vmatprep.subr.mxu0 %v569
    %904 = vmatpush1.msra.mxu0 %v568
    %905 = vmatprep.subr.mxu0 %v573
    %906 = vmatpush1.msra.mxu0 %v572
    %907 = vmatprep.subr.mxu0 %v577
    %908 = vmatpush1.msra.mxu0 %v576
    %909 = vmatprep.subr.mxu0 %v581
    %910 = vmatpush1.msra.mxu0 %v580
    %911 = vmatprep.subr.mxu0 %v585
    %912 = vmatpush1.msra.mxu0 %v584
    %913 = vmatprep.subr.mxu0 %v589
    %914 = vmatpush1.msra.mxu0 %v588
    %915 = vmatprep.subr.mxu0 %v593
    %916 = vmatpush1.msra.mxu0 %v592
    %917 = vmatprep.subr.mxu0 %v597
    %918 = vmatpush1.msra.mxu0 %v596
    %919 = vmatprep.subr.mxu0 %v601
    %920 = vmatpush1.msra.mxu0 %v600
    %921 = vmatprep.subr.mxu0 %v605
    %922 = vmatpush1.msra.mxu0 %v604
    %923 = vmatprep.subr.mxu0 %v609
    %924 = vmatpush1.msra.mxu0 %v608
    %925 = vmatprep.subr.mxu0 %v613
    %926 = vmatpush1.msra.mxu0 %v612
    %927 = vmatprep.subr.mxu0 %v617
    %928 = vmatpush1.msra.mxu0 %v616
    %929 = vmatprep.subr.mxu0 %v621
    %930 = vmatpush1.msra.mxu0 %v620
    %931 = vmatprep.subr.mxu0 %v625
    %932 = vmatpush1.msra.mxu0 %v624
    %933 = vmatprep.subr.mxu0 %v629
    %934 = vmatpush1.msra.mxu0 %v628
    %935 = vmatprep.subr.mxu0 %v633
    %936 = vmatpush1.msra.mxu0 %v632
    %937 = vmatprep.subr.mxu0 %v637
    %938 = vmatpush1.msra.mxu0 %v636
    %939 = vmatprep.subr.mxu0 %v641
    %940 = vmatpush1.msra.mxu0 %v640
    %941 = vmatprep.mubr.f32.mxu0 %v385
    %942 = vmatmul.mubr.f32.gmra.mrb[0].mxu0 %v384
    %v943 = vpop.f32.mrb[0].mxu0
    %v944 = vadd.f32 %v873, %v943
    %v945 = vpop.f32.mrb[0].mxu0
    %v946 = vadd.f32 %v875, %v945
    %947 = vdwg.mxu0
    %v948 = vmax.f32 %v802, 0.0
    %v949 = vmax.f32 %v804, 0.0
    %v950 = vmax.f32 %v944, 0.0
    %v951 = vmax.f32 %v946, 0.0
    %v952 = vadd.s32 %v334, 514
    %v953 = vadd.s32 %v335, 514
    %v954 = vadd.s32 %v336, 514
    %v955 = vadd.s32 %v337, 514
    %v956 = vshrl.u32 %v952, 16
    %v957 = vshrl.u32 %v953, 16
    %v958 = vshrl.u32 %v954, 16
    %v959 = vshrl.u32 %v955, 16
    %v960 = vxor.u32 %v952, %v956
    %v961 = vxor.u32 %v953, %v957
    %v962 = vxor.u32 %v954, %v958
    %v963 = vxor.u32 %v955, %v959
    %v964 = vmul.u32 %v960, 2146121005
    %v965 = vmul.u32 %v961, 2146121005
    %v966 = vmul.u32 %v962, 2146121005
    %v967 = vmul.u32 %v963, 2146121005
    %v968 = vshrl.u32 %v964, 15
    %v969 = vshrl.u32 %v965, 15
    %v970 = vshrl.u32 %v966, 15
    %v971 = vshrl.u32 %v967, 15
    %v972 = vxor.u32 %v964, %v968
    %v973 = vxor.u32 %v965, %v969
    %v974 = vxor.u32 %v966, %v970
    %v975 = vxor.u32 %v967, %v971
    %v976 = vmul.u32 %v972, 2221713035
    %v977 = vmul.u32 %v973, 2221713035
    %v978 = vmul.u32 %v974, 2221713035
    %v979 = vmul.u32 %v975, 2221713035
    %v980 = vshrl.u32 %v976, 16
    %v981 = vshrl.u32 %v977, 16
    %v982 = vshrl.u32 %v978, 16
    %v983 = vshrl.u32 %v979, 16
    %v984 = vxor.u32 %v976, %v980
    %v985 = vxor.u32 %v977, %v981
    %v986 = vxor.u32 %v978, %v982
    %v987 = vxor.u32 %v979, %v983
    %vm988 = vcmp.ge.u32.totalorder %v984, 858993459
    %vm989 = vcmp.ge.u32.totalorder %v985, 858993459
    %vm990 = vcmp.ge.u32.totalorder %v986, 858993459
    %vm991 = vcmp.ge.u32.totalorder %v987, 858993459
    %v992 = vmul.f32 %v948, 1.25
    %v993 = vmul.f32 %v949, 1.25
    %v994 = vmul.f32 %v950, 1.25
    %v995 = vmul.f32 %v951, 1.25
    %v996 = vsel %vm988, %v992, 0.0
    %v997 = vsel %vm989, %v993, 0.0
    %v998 = vsel %vm990, %v994, 0.0
    %v999 = vsel %vm991, %v995, 0.0
    %v1000 = vld [vmem:[#allocation9] sm:$0xff]
    %v1001 = vld [vmem:[#allocation9 + $0x8] sm:$0xff]
    %v1002 = vld [vmem:[#allocation9 + $0x10] sm:$0xff]
    %v1003 = vld [vmem:[#allocation9 + $0x18] sm:$0xff]
    %v1004 = vld [vmem:[#allocation9 + $0x20] sm:$0xff]
    %v1005 = vld [vmem:[#allocation9 + $0x28] sm:$0xff]
    %v1006 = vld [vmem:[#allocation9 + $0x30] sm:$0xff]
    %v1007 = vld [vmem:[#allocation9 + $0x38] sm:$0xff]
    %v1008 = vld [vmem:[#allocation9 + $0x40] sm:$0xff]
    %v1009 = vld [vmem:[#allocation9 + $0x48] sm:$0xff]
    %v1010 = vld [vmem:[#allocation9 + $0x50] sm:$0xff]
    %v1011 = vld [vmem:[#allocation9 + $0x58] sm:$0xff]
    %v1012 = vld [vmem:[#allocation9 + $0x60] sm:$0xff]
    %v1013 = vld [vmem:[#allocation9 + $0x68] sm:$0xff]
    %v1014 = vld [vmem:[#allocation9 + $0x70] sm:$0xff]
    %v1015 = vld [vmem:[#allocation9 + $0x78] sm:$0xff]
    %v1016 = vld [vmem:[#allocation9 + $0x80] sm:$0xff]
    %v1017 = vld [vmem:[#allocation9 + $0x88] sm:$0xff]
    %v1018 = vld [vmem:[#allocation9 + $0x90] sm:$0xff]
    %v1019 = vld [vmem:[#allocation9 + $0x98] sm:$0xff]
    %v1020 = vld [vmem:[#allocation9 + $0xa0] sm:$0xff]
    %v1021 = vld [vmem:[#allocation9 + $0xa8] sm:$0xff]
    %v1022 = vld [vmem:[#allocation9 + $0xb0] sm:$0xff]
    %v1023 = vld [vmem:[#allocation9 + $0xb8] sm:$0xff]
    %v1024 = vld [vmem:[#allocation9 + $0xc0] sm:$0xff]
    %v1025 = vld [vmem:[#allocation9 + $0xc8] sm:$0xff]
    %v1026 = vld [vmem:[#allocation9 + $0xd0] sm:$0xff]
    %v1027 = vld [vmem:[#allocation9 + $0xd8] sm:$0xff]
    %v1028 = vld [vmem:[#allocation9 + $0xe0] sm:$0xff]
    %v1029 = vld [vmem:[#allocation9 + $0xe8] sm:$0xff]
    %v1030 = vld [vmem:[#allocation9 + $0xf0] sm:$0xff]
    %v1031 = vld [vmem:[#allocation9 + $0xf8] sm:$0xff]
    %v1032 = vld [vmem:[#allocation9 + $0x100] sm:$0xff]
    %v1033 = vld [vmem:[#allocation9 + $0x108] sm:$0xff]
    %v1034 = vld [vmem:[#allocation9 + $0x110] sm:$0xff]
    %v1035 = vld [vmem:[#allocation9 + $0x118] sm:$0xff]
    %v1036 = vld [vmem:[#allocation9 + $0x120] sm:$0xff]
    %v1037 = vld [vmem:[#allocation9 + $0x128] sm:$0xff]
    %v1038 = vld [vmem:[#allocation9 + $0x130] sm:$0xff]
    %v1039 = vld [vmem:[#allocation9 + $0x138] sm:$0xff]
    %v1040 = vld [vmem:[#allocation9 + $0x140] sm:$0xff]
    %v1041 = vld [vmem:[#allocation9 + $0x148] sm:$0xff]
    %v1042 = vld [vmem:[#allocation9 + $0x150] sm:$0xff]
    %v1043 = vld [vmem:[#allocation9 + $0x158] sm:$0xff]
    %v1044 = vld [vmem:[#allocation9 + $0x160] sm:$0xff]
    %v1045 = vld [vmem:[#allocation9 + $0x168] sm:$0xff]
    %v1046 = vld [vmem:[#allocation9 + $0x170] sm:$0xff]
    %v1047 = vld [vmem:[#allocation9 + $0x178] sm:$0xff]
    %v1048 = vld [vmem:[#allocation9 + $0x180] sm:$0xff]
    %v1049 = vld [vmem:[#allocation9 + $0x188] sm:$0xff]
    %v1050 = vld [vmem:[#allocation9 + $0x190] sm:$0xff]
    %v1051 = vld [vmem:[#allocation9 + $0x198] sm:$0xff]
    %v1052 = vld [vmem:[#allocation9 + $0x1a0] sm:$0xff]
    %v1053 = vld [vmem:[#allocation9 + $0x1a8] sm:$0xff]
    %v1054 = vld [vmem:[#allocation9 + $0x1b0] sm:$0xff]
    %v1055 = vld [vmem:[#allocation9 + $0x1b8] sm:$0xff]
    %v1056 = vld [vmem:[#allocation9 + $0x1c0] sm:$0xff]
    %v1057 = vld [vmem:[#allocation9 + $0x1c8] sm:$0xff]
    %v1058 = vld [vmem:[#allocation9 + $0x1d0] sm:$0xff]
    %v1059 = vld [vmem:[#allocation9 + $0x1d8] sm:$0xff]
    %v1060 = vld [vmem:[#allocation9 + $0x1e0] sm:$0xff]
    %v1061 = vld [vmem:[#allocation9 + $0x1e8] sm:$0xff]
    %v1062 = vld [vmem:[#allocation9 + $0x1f0] sm:$0xff]
    %v1063 = vld [vmem:[#allocation9 + $0x1f8] sm:$0xff]
    %v1064 = vld [vmem:[#allocation9 + $0x200] sm:$0xff]
    %v1065 = vld [vmem:[#allocation9 + $0x208] sm:$0xff]
    %v1066 = vld [vmem:[#allocation9 + $0x210] sm:$0xff]
    %v1067 = vld [vmem:[#allocation9 + $0x218] sm:$0xff]
    %v1068 = vld [vmem:[#allocation9 + $0x220] sm:$0xff]
    %v1069 = vld [vmem:[#allocation9 + $0x228] sm:$0xff]
    %v1070 = vld [vmem:[#allocation9 + $0x230] sm:$0xff]
    %v1071 = vld [vmem:[#allocation9 + $0x238] sm:$0xff]
    %v1072 = vld [vmem:[#allocation9 + $0x240] sm:$0xff]
    %v1073 = vld [vmem:[#allocation9 + $0x248] sm:$0xff]
    %v1074 = vld [vmem:[#allocation9 + $0x250] sm:$0xff]
    %v1075 = vld [vmem:[#allocation9 + $0x258] sm:$0xff]
    %v1076 = vld [vmem:[#allocation9 + $0x260] sm:$0xff]
    %v1077 = vld [vmem:[#allocation9 + $0x268] sm:$0xff]
    %v1078 = vld [vmem:[#allocation9 + $0x270] sm:$0xff]
    %v1079 = vld [vmem:[#allocation9 + $0x278] sm:$0xff]
    %v1080 = vld [vmem:[#allocation9 + $0x280] sm:$0xff]
    %v1081 = vld [vmem:[#allocation9 + $0x288] sm:$0xff]
    %v1082 = vld [vmem:[#allocation9 + $0x290] sm:$0xff]
    %v1083 = vld [vmem:[#allocation9 + $0x298] sm:$0xff]
    %v1084 = vld [vmem:[#allocation9 + $0x2a0] sm:$0xff]
    %v1085 = vld [vmem:[#allocation9 + $0x2a8] sm:$0xff]
    %v1086 = vld [vmem:[#allocation9 + $0x2b0] sm:$0xff]
    %v1087 = vld [vmem:[#allocation9 + $0x2b8] sm:$0xff]
    %v1088 = vld [vmem:[#allocation9 + $0x2c0] sm:$0xff]
    %v1089 = vld [vmem:[#allocation9 + $0x2c8] sm:$0xff]
    %v1090 = vld [vmem:[#allocation9 + $0x2d0] sm:$0xff]
    %v1091 = vld [vmem:[#allocation9 + $0x2d8] sm:$0xff]
    %v1092 = vld [vmem:[#allocation9 + $0x2e0] sm:$0xff]
    %v1093 = vld [vmem:[#allocation9 + $0x2e8] sm:$0xff]
    %v1094 = vld [vmem:[#allocation9 + $0x2f0] sm:$0xff]
    %v1095 = vld [vmem:[#allocation9 + $0x2f8] sm:$0xff]
    %v1096 = vld [vmem:[#allocation9 + $0x300] sm:$0xff]
    %v1097 = vld [vmem:[#allocation9 + $0x308] sm:$0xff]
    %v1098 = vld [vmem:[#allocation9 + $0x310] sm:$0xff]
    %v1099 = vld [vmem:[#allocation9 + $0x318] sm:$0xff]
    %v1100 = vld [vmem:[#allocation9 + $0x320] sm:$0xff]
    %v1101 = vld [vmem:[#allocation9 + $0x328] sm:$0xff]
    %v1102 = vld [vmem:[#allocation9 + $0x330] sm:$0xff]
    %v1103 = vld [vmem:[#allocation9 + $0x338] sm:$0xff]
    %v1104 = vld [vmem:[#allocation9 + $0x340] sm:$0xff]
    %v1105 = vld [vmem:[#allocation9 + $0x348] sm:$0xff]
    %v1106 = vld [vmem:[#allocation9 + $0x350] sm:$0xff]
    %v1107 = vld [vmem:[#allocation9 + $0x358] sm:$0xff]
    %v1108 = vld [vmem:[#allocation9 + $0x360] sm:$0xff]
    %v1109 = vld [vmem:[#allocation9 + $0x368] sm:$0xff]
    %v1110 = vld [vmem:[#allocation9 + $0x370] sm:$0xff]
    %v1111 = vld [vmem:[#allocation9 + $0x378] sm:$0xff]
    %v1112 = vld [vmem:[#allocation9 + $0x380] sm:$0xff]
    %v1113 = vld [vmem:[#allocation9 + $0x388] sm:$0xff]
    %v1114 = vld [vmem:[#allocation9 + $0x390] sm:$0xff]
    %v1115 = vld [vmem:[#allocation9 + $0x398] sm:$0xff]
    %v1116 = vld [vmem:[#allocation9 + $0x3a0] sm:$0xff]
    %v1117 = vld [vmem:[#allocation9 + $0x3a8] sm:$0xff]
    %v1118 = vld [vmem:[#allocation9 + $0x3b0] sm:$0xff]
    %v1119 = vld [vmem:[#allocation9 + $0x3b8] sm:$0xff]
    %v1120 = vld [vmem:[#allocation9 + $0x3c0] sm:$0xff]
    %v1121 = vld [vmem:[#allocation9 + $0x3c8] sm:$0xff]
    %v1122 = vld [vmem:[#allocation9 + $0x3d0] sm:$0xff]
    %v1123 = vld [vmem:[#allocation9 + $0x3d8] sm:$0xff]
    %v1124 = vld [vmem:[#allocation9 + $0x3e0] sm:$0xff]
    %v1125 = vld [vmem:[#allocation9 + $0x3e8] sm:$0xff]
    %v1126 = vld [vmem:[#allocation9 + $0x3f0] sm:$0xff]
    %v1127 = vld [vmem:[#allocation9 + $0x3f8] sm:$0xff]
    %v1128 = vld [vmem:[#allocation9 + $0x400] sm:$0xff]
    %v1129 = vld [vmem:[#allocation9 + $0x408] sm:$0xff]
    %v1130 = vld [vmem:[#allocation9 + $0x410] sm:$0xff]
    %v1131 = vld [vmem:[#allocation9 + $0x418] sm:$0xff]
    %v1132 = vld [vmem:[#allocation9 + $0x420] sm:$0xff]
    %v1133 = vld [vmem:[#allocation9 + $0x428] sm:$0xff]
    %v1134 = vld [vmem:[#allocation9 + $0x430] sm:$0xff]
    %v1135 = vld [vmem:[#allocation9 + $0x438] sm:$0xff]
    %v1136 = vld [vmem:[#allocation9 + $0x440] sm:$0xff]
    %v1137 = vld [vmem:[#allocation9 + $0x448] sm:$0xff]
    %v1138 = vld [vmem:[#allocation9 + $0x450] sm:$0xff]
    %v1139 = vld [vmem:[#allocation9 + $0x458] sm:$0xff]
    %v1140 = vld [vmem:[#allocation9 + $0x460] sm:$0xff]
    %v1141 = vld [vmem:[#allocation9 + $0x468] sm:$0xff]
    %v1142 = vld [vmem:[#allocation9 + $0x470] sm:$0xff]
    %v1143 = vld [vmem:[#allocation9 + $0x478] sm:$0xff]
    %v1144 = vld [vmem:[#allocation9 + $0x480] sm:$0xff]
    %v1145 = vld [vmem:[#allocation9 + $0x488] sm:$0xff]
    %v1146 = vld [vmem:[#allocation9 + $0x490] sm:$0xff]
    %v1147 = vld [vmem:[#allocation9 + $0x498] sm:$0xff]
    %v1148 = vld [vmem:[#allocation9 + $0x4a0] sm:$0xff]
    %v1149 = vld [vmem:[#allocation9 + $0x4a8] sm:$0xff]
    %v1150 = vld [vmem:[#allocation9 + $0x4b0] sm:$0xff]
    %v1151 = vld [vmem:[#allocation9 + $0x4b8] sm:$0xff]
    %v1152 = vld [vmem:[#allocation9 + $0x4c0] sm:$0xff]
    %v1153 = vld [vmem:[#allocation9 + $0x4c8] sm:$0xff]
    %v1154 = vld [vmem:[#allocation9 + $0x4d0] sm:$0xff]
    %v1155 = vld [vmem:[#allocation9 + $0x4d8] sm:$0xff]
    %v1156 = vld [vmem:[#allocation9 + $0x4e0] sm:$0xff]
    %v1157 = vld [vmem:[#allocation9 + $0x4e8] sm:$0xff]
    %v1158 = vld [vmem:[#allocation9 + $0x4f0] sm:$0xff]
    %v1159 = vld [vmem:[#allocation9 + $0x4f8] sm:$0xff]
    %v1160 = vld [vmem:[#allocation9 + $0x500] sm:$0xff]
    %v1161 = vld [vmem:[#allocation9 + $0x508] sm:$0xff]
    %v1162 = vld [vmem:[#allocation9 + $0x510] sm:$0xff]
    %v1163 = vld [vmem:[#allocation9 + $0x518] sm:$0xff]
    %v1164 = vld [vmem:[#allocation9 + $0x520] sm:$0xff]
    %v1165 = vld [vmem:[#allocation9 + $0x528] sm:$0xff]
    %v1166 = vld [vmem:[#allocation9 + $0x530] sm:$0xff]
    %v1167 = vld [vmem:[#allocation9 + $0x538] sm:$0xff]
    %v1168 = vld [vmem:[#allocation9 + $0x540] sm:$0xff]
    %v1169 = vld [vmem:[#allocation9 + $0x548] sm:$0xff]
    %v1170 = vld [vmem:[#allocation9 + $0x550] sm:$0xff]
    %v1171 = vld [vmem:[#allocation9 + $0x558] sm:$0xff]
    %v1172 = vld [vmem:[#allocation9 + $0x560] sm:$0xff]
    %v1173 = vld [vmem:[#allocation9 + $0x568] sm:$0xff]
    %v1174 = vld [vmem:[#allocation9 + $0x570] sm:$0xff]
    %v1175 = vld [vmem:[#allocation9 + $0x578] sm:$0xff]
    %v1176 = vld [vmem:[#allocation9 + $0x580] sm:$0xff]
    %v1177 = vld [vmem:[#allocation9 + $0x588] sm:$0xff]
    %v1178 = vld [vmem:[#allocation9 + $0x590] sm:$0xff]
    %v1179 = vld [vmem:[#allocation9 + $0x598] sm:$0xff]
    %v1180 = vld [vmem:[#allocation9 + $0x5a0] sm:$0xff]
    %v1181 = vld [vmem:[#allocation9 + $0x5a8] sm:$0xff]
    %v1182 = vld [vmem:[#allocation9 + $0x5b0] sm:$0xff]
    %v1183 = vld [vmem:[#allocation9 + $0x5b8] sm:$0xff]
    %v1184 = vld [vmem:[#allocation9 + $0x5c0] sm:$0xff]
    %v1185 = vld [vmem:[#allocation9 + $0x5c8] sm:$0xff]
    %v1186 = vld [vmem:[#allocation9 + $0x5d0] sm:$0xff]
    %v1187 = vld [vmem:[#allocation9 + $0x5d8] sm:$0xff]
    %v1188 = vld [vmem:[#allocation9 + $0x5e0] sm:$0xff]
    %v1189 = vld [vmem:[#allocation9 + $0x5e8] sm:$0xff]
    %v1190 = vld [vmem:[#allocation9 + $0x5f0] sm:$0xff]
    %v1191 = vld [vmem:[#allocation9 + $0x5f8] sm:$0xff]
    %v1192 = vld [vmem:[#allocation9 + $0x600] sm:$0xff]
    %v1193 = vld [vmem:[#allocation9 + $0x608] sm:$0xff]
    %v1194 = vld [vmem:[#allocation9 + $0x610] sm:$0xff]
    %v1195 = vld [vmem:[#allocation9 + $0x618] sm:$0xff]
    %v1196 = vld [vmem:[#allocation9 + $0x620] sm:$0xff]
    %v1197 = vld [vmem:[#allocation9 + $0x628] sm:$0xff]
    %v1198 = vld [vmem:[#allocation9 + $0x630] sm:$0xff]
    %v1199 = vld [vmem:[#allocation9 + $0x638] sm:$0xff]
    %v1200 = vld [vmem:[#allocation9 + $0x640] sm:$0xff]
    %v1201 = vld [vmem:[#allocation9 + $0x648] sm:$0xff]
    %v1202 = vld [vmem:[#allocation9 + $0x650] sm:$0xff]
    %v1203 = vld [vmem:[#allocation9 + $0x658] sm:$0xff]
    %v1204 = vld [vmem:[#allocation9 + $0x660] sm:$0xff]
    %v1205 = vld [vmem:[#allocation9 + $0x668] sm:$0xff]
    %v1206 = vld [vmem:[#allocation9 + $0x670] sm:$0xff]
    %v1207 = vld [vmem:[#allocation9 + $0x678] sm:$0xff]
    %v1208 = vld [vmem:[#allocation9 + $0x680] sm:$0xff]
    %v1209 = vld [vmem:[#allocation9 + $0x688] sm:$0xff]
    %v1210 = vld [vmem:[#allocation9 + $0x690] sm:$0xff]
    %v1211 = vld [vmem:[#allocation9 + $0x698] sm:$0xff]
    %v1212 = vld [vmem:[#allocation9 + $0x6a0] sm:$0xff]
    %v1213 = vld [vmem:[#allocation9 + $0x6a8] sm:$0xff]
    %v1214 = vld [vmem:[#allocation9 + $0x6b0] sm:$0xff]
    %v1215 = vld [vmem:[#allocation9 + $0x6b8] sm:$0xff]
    %v1216 = vld [vmem:[#allocation9 + $0x6c0] sm:$0xff]
    %v1217 = vld [vmem:[#allocation9 + $0x6c8] sm:$0xff]
    %v1218 = vld [vmem:[#allocation9 + $0x6d0] sm:$0xff]
    %v1219 = vld [vmem:[#allocation9 + $0x6d8] sm:$0xff]
    %v1220 = vld [vmem:[#allocation9 + $0x6e0] sm:$0xff]
    %v1221 = vld [vmem:[#allocation9 + $0x6e8] sm:$0xff]
    %v1222 = vld [vmem:[#allocation9 + $0x6f0] sm:$0xff]
    %v1223 = vld [vmem:[#allocation9 + $0x6f8] sm:$0xff]
    %v1224 = vld [vmem:[#allocation9 + $0x700] sm:$0xff]
    %v1225 = vld [vmem:[#allocation9 + $0x708] sm:$0xff]
    %v1226 = vld [vmem:[#allocation9 + $0x710] sm:$0xff]
    %v1227 = vld [vmem:[#allocation9 + $0x718] sm:$0xff]
    %v1228 = vld [vmem:[#allocation9 + $0x720] sm:$0xff]
    %v1229 = vld [vmem:[#allocation9 + $0x728] sm:$0xff]
    %v1230 = vld [vmem:[#allocation9 + $0x730] sm:$0xff]
    %v1231 = vld [vmem:[#allocation9 + $0x738] sm:$0xff]
    %v1232 = vld [vmem:[#allocation9 + $0x740] sm:$0xff]
    %v1233 = vld [vmem:[#allocation9 + $0x748] sm:$0xff]
    %v1234 = vld [vmem:[#allocation9 + $0x750] sm:$0xff]
    %v1235 = vld [vmem:[#allocation9 + $0x758] sm:$0xff]
    %v1236 = vld [vmem:[#allocation9 + $0x760] sm:$0xff]
    %v1237 = vld [vmem:[#allocation9 + $0x768] sm:$0xff]
    %v1238 = vld [vmem:[#allocation9 + $0x770] sm:$0xff]
    %v1239 = vld [vmem:[#allocation9 + $0x778] sm:$0xff]
    %v1240 = vld [vmem:[#allocation9 + $0x780] sm:$0xff]
    %v1241 = vld [vmem:[#allocation9 + $0x788] sm:$0xff]
    %v1242 = vld [vmem:[#allocation9 + $0x790] sm:$0xff]
    %v1243 = vld [vmem:[#allocation9 + $0x798] sm:$0xff]
    %v1244 = vld [vmem:[#allocation9 + $0x7a0] sm:$0xff]
    %v1245 = vld [vmem:[#allocation9 + $0x7a8] sm:$0xff]
    %v1246 = vld [vmem:[#allocation9 + $0x7b0] sm:$0xff]
    %v1247 = vld [vmem:[#allocation9 + $0x7b8] sm:$0xff]
    %v1248 = vld [vmem:[#allocation9 + $0x7c0] sm:$0xff]
    %v1249 = vld [vmem:[#allocation9 + $0x7c8] sm:$0xff]
    %v1250 = vld [vmem:[#allocation9 + $0x7d0] sm:$0xff]
    %v1251 = vld [vmem:[#allocation9 + $0x7d8] sm:$0xff]
    %v1252 = vld [vmem:[#allocation9 + $0x7e0] sm:$0xff]
    %v1253 = vld [vmem:[#allocation9 + $0x7e8] sm:$0xff]
    %v1254 = vld [vmem:[#allocation9 + $0x7f0] sm:$0xff]
    %v1255 = vld [vmem:[#allocation9 + $0x7f8] sm:$0xff]
    %v1256 = vld [vmem:[%s7] sm:$0xf]
    %v1258 = vlaneseq
    %v1259 = vshrl.u32 %v1258, 7
    %v1260 = vsub.s32 0, %v1259
    %v1261 = vrot.slane %v1256, %v1260
    %v1262 = vlaneseq
    %v1263 = vshrl.u32 %v1262, 7
    %v1264 = vsub.s32 1, %v1263
    %v1265 = vrot.slane %v1256, %v1264
    %v1266 = vlaneseq
    %v1267 = vshrl.u32 %v1266, 7
    %v1268 = vsub.s32 2, %v1267
    %v1269 = vrot.slane %v1256, %v1268
    %v1270 = vlaneseq
    %v1271 = vshrl.u32 %v1270, 7
    %v1272 = vsub.s32 3, %v1271
    %v1273 = vrot.slane %v1256, %v1272
    %1278 = vmatprep.subr.mxu0 %v1001
    %1279 = vmatpush1.msra.mxu0 %v1000
    %1280 = vmatprep.subr.mxu0 %v1005
    %1281 = vmatpush1.msra.mxu0 %v1004
    %1282 = vmatprep.subr.mxu0 %v1009
    %1283 = vmatpush1.msra.mxu0 %v1008
    %1284 = vmatprep.subr.mxu0 %v1013
    %1285 = vmatpush1.msra.mxu0 %v1012
    %1286 = vmatprep.subr.mxu0 %v1017
    %1287 = vmatpush1.msra.mxu0 %v1016
    %1288 = vmatprep.subr.mxu0 %v1021
    %1289 = vmatpush1.msra.mxu0 %v1020
    %1290 = vmatprep.subr.mxu0 %v1025
    %1291 = vmatpush1.msra.mxu0 %v1024
    %1292 = vmatprep.subr.mxu0 %v1029
    %1293 = vmatpush1.msra.mxu0 %v1028
    %1294 = vmatprep.subr.mxu0 %v1033
    %1295 = vmatpush1.msra.mxu0 %v1032
    %1296 = vmatprep.subr.mxu0 %v1037
    %1297 = vmatpush1.msra.mxu0 %v1036
    %1298 = vmatprep.subr.mxu0 %v1041
    %1299 = vmatpush1.msra.mxu0 %v1040
    %1300 = vmatprep.subr.mxu0 %v1045
    %1301 = vmatpush1.msra.mxu0 %v1044
    %1302 = vmatprep.subr.mxu0 %v1049
    %1303 = vmatpush1.msra.mxu0 %v1048
    %1304 = vmatprep.subr.mxu0 %v1053
    %1305 = vmatpush1.msra.mxu0 %v1052
    %1306 = vmatprep.subr.mxu0 %v1057
    %1307 = vmatpush1.msra.mxu0 %v1056
    %1308 = vmatprep.subr.mxu0 %v1061
    %1309 = vmatpush1.msra.mxu0 %v1060
    %1310 = vmatprep.subr.mxu0 %v1065
    %1311 = vmatpush1.msra.mxu0 %v1064
    %1312 = vmatprep.subr.mxu0 %v1069
    %1313 = vmatpush1.msra.mxu0 %v1068
    %1314 = vmatprep.subr.mxu0 %v1073
    %1315 = vmatpush1.msra.mxu0 %v1072
    %1316 = vmatprep.subr.mxu0 %v1077
    %1317 = vmatpush1.msra.mxu0 %v1076
    %1318 = vmatprep.subr.mxu0 %v1081
    %1319 = vmatpush1.msra.mxu0 %v1080
    %1320 = vmatprep.subr.mxu0 %v1085
    %1321 = vmatpush1.msra.mxu0 %v1084
    %1322 = vmatprep.subr.mxu0 %v1089
    %1323 = vmatpush1.msra.mxu0 %v1088
    %1324 = vmatprep.subr.mxu0 %v1093
    %1325 = vmatpush1.msra.mxu0 %v1092
    %1326 = vmatprep.subr.mxu0 %v1097
    %1327 = vmatpush1.msra.mxu0 %v1096
    %1328 = vmatprep.subr.mxu0 %v1101
    %1329 = vmatpush1.msra.mxu0 %v1100
    %1330 = vmatprep.subr.mxu0 %v1105
    %1331 = vmatpush1.msra.mxu0 %v1104
    %1332 = vmatprep.subr.mxu0 %v1109
    %1333 = vmatpush1.msra.mxu0 %v1108
    %1334 = vmatprep.subr.mxu0 %v1113
    %1335 = vmatpush1.msra.mxu0 %v1112
    %1336 = vmatprep.subr.mxu0 %v1117
    %1337 = vmatpush1.msra.mxu0 %v1116
    %1338 = vmatprep.subr.mxu0 %v1121
    %1339 = vmatpush1.msra.mxu0 %v1120
    %1340 = vmatprep.subr.mxu0 %v1125
    %1341 = vmatpush1.msra.mxu0 %v1124
    %1342 = vmatprep.mubr.f32.mxu0 %v997
    %1343 = vmatmul.mubr.f32.gmra.mrb[0].mxu0 %v996
    %v1344 = vpop.f32.mrb[0].mxu0
    %v1345 = vadd.f32 %v1261, %v1344
    %v1346 = vpop.f32.mrb[0].mxu0
    %v1347 = vadd.f32 %v1265, %v1346
    %1348 = vdwg.mxu0
    %1349 = vmatprep.subr.mxu0 %v1129
    %1350 = vmatpush1.msra.mxu0 %v1128
    %1351 = vmatprep.subr.mxu0 %v1133
    %1352 = vmatpush1.msra.mxu0 %v1132
    %1353 = vmatprep.subr.mxu0 %v1137
    %1354 = vmatpush1.msra.mxu0 %v1136
    %1355 = vmatprep.subr.mxu0 %v1141
    %1356 = vmatpush1.msra.mxu0 %v1140
    %1357 = vmatprep.subr.mxu0 %v1145
    %1358 = vmatpush1.msra.mxu0 %v1144
    %1359 = vmatprep.subr.mxu0 %v1149
    %1360 = vmatpush1.msra.mxu0 %v1148
    %1361 = vmatprep.subr.mxu0 %v1153
    %1362 = vmatpush1.msra.mxu0 %v1152
    %1363 = vmatprep.subr.mxu0 %v1157
    %1364 = vmatpush1.msra.mxu0 %v1156
    %1365 = vmatprep.subr.mxu0 %v1161
    %1366 = vmatpush1.msra.mxu0 %v1160
    %1367 = vmatprep.subr.mxu0 %v1165
    %1368 = vmatpush1.msra.mxu0 %v1164
    %1369 = vmatprep.subr.mxu0 %v1169
    %1370 = vmatpush1.msra.mxu0 %v1168
    %1371 = vmatprep.subr.mxu0 %v1173
    %1372 = vmatpush1.msra.mxu0 %v1172
    %1373 = vmatprep.subr.mxu0 %v1177
    %1374 = vmatpush1.msra.mxu0 %v1176
    %1375 = vmatprep.subr.mxu0 %v1181
    %1376 = vmatpush1.msra.mxu0 %v1180
    %1377 = vmatprep.subr.mxu0 %v1185
    %1378 = vmatpush1.msra.mxu0 %v1184
    %1379 = vmatprep.subr.mxu0 %v1189
    %1380 = vmatpush1.msra.mxu0 %v1188
    %1381 = vmatprep.subr.mxu0 %v1193
    %1382 = vmatpush1.msra.mxu0 %v1192
    %1383 = vmatprep.subr.mxu0 %v1197
    %1384 = vmatpush1.msra.mxu0 %v1196
    %1385 = vmatprep.subr.mxu0 %v1201
    %1386 = vmatpush1.msra.mxu0 %v1200
    %1387 = vmatprep.subr.mxu0 %v1205
    %1388 = vmatpush1.msra.mxu0 %v1204
    %1389 = vmatprep.subr.mxu0 %v1209
    %1390 = vmatpush1.msra.mxu0 %v1208
    %1391 = vmatprep.subr.mxu0 %v1213
    %1392 = vmatpush1.msra.mxu0 %v1212
    %1393 = vmatprep.subr.mxu0 %v1217
    %1394 = vmatpush1.msra.mxu0 %v1216
    %1395 = vmatprep.subr.mxu0 %v1221
    %1396 = vmatpush1.msra.mxu0 %v1220
    %1397 = vmatprep.subr.mxu0 %v1225
    %1398 = vmatpush1.msra.mxu0 %v1224
    %1399 = vmatprep.subr.mxu0 %v1229
    %1400 = vmatpush1.msra.mxu0 %v1228
    %1401 = vmatprep.subr.mxu0 %v1233
    %1402 = vmatpush1.msra.mxu0 %v1232
    %1403 = vmatprep.subr.mxu0 %v1237
    %1404 = vmatpush1.msra.mxu0 %v1236
    %1405 = vmatprep.subr.mxu0 %v1241
    %1406 = vmatpush1.msra.mxu0 %v1240
    %1407 = vmatprep.subr.mxu0 %v1245
    %1408 = vmatpush1.msra.mxu0 %v1244
    %1409 = vmatprep.subr.mxu0 %v1249
    %1410 = vmatpush1.msra.mxu0 %v1248
    %1411 = vmatprep.subr.mxu0 %v1253
    %1412 = vmatpush1.msra.mxu0 %v1252
    %1413 = vmatprep.mubr.f32.mxu0 %v999
    %1414 = vmatmul.mubr.f32.gmra.mrb[0].mxu0 %v998
    %v1415 = vpop.f32.mrb[0].mxu0
    %v1416 = vadd.f32 %v1345, %v1415
    %v1417 = vpop.f32.mrb[0].mxu0
    %v1418 = vadd.f32 %v1347, %v1417
    %1419 = vdwg.mxu0
    %1420 = vmatprep.subr.mxu0 %v1003
    %1421 = vmatpush1.msra.mxu0 %v1002
    %1422 = vmatprep.subr.mxu0 %v1007
    %1423 = vmatpush1.msra.mxu0 %v1006
    %1424 = vmatprep.subr.mxu0 %v1011
    %1425 = vmatpush1.msra.mxu0 %v1010
    %1426 = vmatprep.subr.mxu0 %v1015
    %1427 = vmatpush1.msra.mxu0 %v1014
    %1428 = vmatprep.subr.mxu0 %v1019
    %1429 = vmatpush1.msra.mxu0 %v1018
    %1430 = vmatprep.subr.mxu0 %v1023
    %1431 = vmatpush1.msra.mxu0 %v1022
    %1432 = vmatprep.subr.mxu0 %v1027
    %1433 = vmatpush1.msra.mxu0 %v1026
    %1434 = vmatprep.subr.mxu0 %v1031
    %1435 = vmatpush1.msra.mxu0 %v1030
    %1436 = vmatprep.subr.mxu0 %v1035
    %1437 = vmatpush1.msra.mxu0 %v1034
    %1438 = vmatprep.subr.mxu0 %v1039
    %1439 = vmatpush1.msra.mxu0 %v1038
    %1440 = vmatprep.subr.mxu0 %v1043
    %1441 = vmatpush1.msra.mxu0 %v1042
    %1442 = vmatprep.subr.mxu0 %v1047
    %1443 = vmatpush1.msra.mxu0 %v1046
    %1444 = vmatprep.subr.mxu0 %v1051
    %1445 = vmatpush1.msra.mxu0 %v1050
    %1446 = vmatprep.subr.mxu0 %v1055
    %1447 = vmatpush1.msra.mxu0 %v1054
    %1448 = vmatprep.subr.mxu0 %v1059
    %1449 = vmatpush1.msra.mxu0 %v1058
    %1450 = vmatprep.subr.mxu0 %v1063
    %1451 = vmatpush1.msra.mxu0 %v1062
    %1452 = vmatprep.subr.mxu0 %v1067
    %1453 = vmatpush1.msra.mxu0 %v1066
    %1454 = vmatprep.subr.mxu0 %v1071
    %1455 = vmatpush1.msra.mxu0 %v1070
    %1456 = vmatprep.subr.mxu0 %v1075
    %1457 = vmatpush1.msra.mxu0 %v1074
    %1458 = vmatprep.subr.mxu0 %v1079
    %1459 = vmatpush1.msra.mxu0 %v1078
    %1460 = vmatprep.subr.mxu0 %v1083
    %1461 = vmatpush1.msra.mxu0 %v1082
    %1462 = vmatprep.subr.mxu0 %v1087
    %1463 = vmatpush1.msra.mxu0 %v1086
    %1464 = vmatprep.subr.mxu0 %v1091
    %1465 = vmatpush1.msra.mxu0 %v1090
    %1466 = vmatprep.subr.mxu0 %v1095
    %1467 = vmatpush1.msra.mxu0 %v1094
    %1468 = vmatprep.subr.mxu0 %v1099
    %1469 = vmatpush1.msra.mxu0 %v1098
    %1470 = vmatprep.subr.mxu0 %v1103
    %1471 = vmatpush1.msra.mxu0 %v1102
    %1472 = vmatprep.subr.mxu0 %v1107
    %1473 = vmatpush1.msra.mxu0 %v1106
    %1474 = vmatprep.subr.mxu0 %v1111
    %1475 = vmatpush1.msra.mxu0 %v1110
    %1476 = vmatprep.subr.mxu0 %v1115
    %1477 = vmatpush1.msra.mxu0 %v1114
    %1478 = vmatprep.subr.mxu0 %v1119
    %1479 = vmatpush1.msra.mxu0 %v1118
    %1480 = vmatprep.subr.mxu0 %v1123
    %1481 = vmatpush1.msra.mxu0 %v1122
    %1482 = vmatprep.subr.mxu0 %v1127
    %1483 = vmatpush1.msra.mxu0 %v1126
    %1484 = vmatprep.mubr.f32.mxu0 %v997
    %1485 = vmatmul.mubr.f32.gmra.mrb[0].mxu0 %v996
    %v1486 = vpop.f32.mrb[0].mxu0
    %v1487 = vadd.f32 %v1269, %v1486
    %v1488 = vpop.f32.mrb[0].mxu0
    %v1489 = vadd.f32 %v1273, %v1488
    %1490 = vdwg.mxu0
    %1491 = vmatprep.subr.mxu0 %v1131
    %1492 = vmatpush1.msra.mxu0 %v1130
    %1493 = vmatprep.subr.mxu0 %v1135
    %1494 = vmatpush1.msra.mxu0 %v1134
    %1495 = vmatprep.subr.mxu0 %v1139
    %1496 = vmatpush1.msra.mxu0 %v1138
    %1497 = vmatprep.subr.mxu0 %v1143
    %1498 = vmatpush1.msra.mxu0 %v1142
    %1499 = vmatprep.subr.mxu0 %v1147
    %1500 = vmatpush1.msra.mxu0 %v1146
    %1501 = vmatprep.subr.mxu0 %v1151
    %1502 = vmatpush1.msra.mxu0 %v1150
    %1503 = vmatprep.subr.mxu0 %v1155
    %1504 = vmatpush1.msra.mxu0 %v1154
    %1505 = vmatprep.subr.mxu0 %v1159
    %1506 = vmatpush1.msra.mxu0 %v1158
    %1507 = vmatprep.subr.mxu0 %v1163
    %1508 = vmatpush1.msra.mxu0 %v1162
    %1509 = vmatprep.subr.mxu0 %v1167
    %1510 = vmatpush1.msra.mxu0 %v1166
    %1511 = vmatprep.subr.mxu0 %v1171
    %1512 = vmatpush1.msra.mxu0 %v1170
    %1513 = vmatprep.subr.mxu0 %v1175
    %1514 = vmatpush1.msra.mxu0 %v1174
    %1515 = vmatprep.subr.mxu0 %v1179
    %1516 = vmatpush1.msra.mxu0 %v1178
    %1517 = vmatprep.subr.mxu0 %v1183
    %1518 = vmatpush1.msra.mxu0 %v1182
    %1519 = vmatprep.subr.mxu0 %v1187
    %1520 = vmatpush1.msra.mxu0 %v1186
    %1521 = vmatprep.subr.mxu0 %v1191
    %1522 = vmatpush1.msra.mxu0 %v1190
    %1523 = vmatprep.subr.mxu0 %v1195
    %1524 = vmatpush1.msra.mxu0 %v1194
    %1525 = vmatprep.subr.mxu0 %v1199
    %1526 = vmatpush1.msra.mxu0 %v1198
    %1527 = vmatprep.subr.mxu0 %v1203
    %1528 = vmatpush1.msra.mxu0 %v1202
    %1529 = vmatprep.subr.mxu0 %v1207
    %1530 = vmatpush1.msra.mxu0 %v1206
    %1531 = vmatprep.subr.mxu0 %v1211
    %1532 = vmatpush1.msra.mxu0 %v1210
    %1533 = vmatprep.subr.mxu0 %v1215
    %1534 = vmatpush1.msra.mxu0 %v1214
    %1535 = vmatprep.subr.mxu0 %v1219
    %1536 = vmatpush1.msra.mxu0 %v1218
    %1537 = vmatprep.subr.mxu0 %v1223
    %1538 = vmatpush1.msra.mxu0 %v1222
    %1539 = vmatprep.subr.mxu0 %v1227
    %1540 = vmatpush1.msra.mxu0 %v1226
    %1541 = vmatprep.subr.mxu0 %v1231
    %1542 = vmatpush1.msra.mxu0 %v1230
    %1543 = vmatprep.subr.mxu0 %v1235
    %1544 = vmatpush1.msra.mxu0 %v1234
    %1545 = vmatprep.subr.mxu0 %v1239
    %1546 = vmatpush1.msra.mxu0 %v1238
    %1547 = vmatprep.subr.mxu0 %v1243
    %1548 = vmatpush1.msra.mxu0 %v1242
    %1549 = vmatprep.subr.mxu0 %v1247
    %1550 = vmatpush1.msra.mxu0 %v1246
    %1551 = vmatprep.subr.mxu0 %v1251
    %1552 = vmatpush1.msra.mxu0 %v1250
    %1553 = vmatprep.subr.mxu0 %v1255
    %1554 = vmatpush1.msra.mxu0 %v1254
    %1555 = vmatprep.mubr.f32.mxu0 %v999
    %1556 = vmatmul.mubr.f32.gmra.mrb[0].mxu0 %v998
    %v1557 = vpop.f32.mrb[0].mxu0
    %v1558 = vadd.f32 %v1487, %v1557
    %v1559 = vpop.f32.mrb[0].mxu0
    %v1560 = vadd.f32 %v1489, %v1559
    %1561 = vdwg.mxu0
    %v1562 = vmax.f32 %v1416, 0.0
    %v1563 = vmax.f32 %v1418, 0.0
    %v1564 = vmax.f32 %v1558, 0.0
    %v1565 = vmax.f32 %v1560, 0.0
    %v1566 = vadd.s32 %v334, 771
    %v1567 = vadd.s32 %v335, 771
    %v1568 = vadd.s32 %v336, 771
    %v1569 = vadd.s32 %v337, 771
    %v1570 = vshrl.u32 %v1566, 16
    %v1571 = vshrl.u32 %v1567, 16
    %v1572 = vshrl.u32 %v1568, 16
    %v1573 = vshrl.u32 %v1569, 16
    %v1574 = vxor.u32 %v1566, %v1570
    %v1575 = vxor.u32 %v1567, %v1571
    %v1576 = vxor.u32 %v1568, %v1572
    %v1577 = vxor.u32 %v1569, %v1573
    %v1578 = vmul.u32 %v1574, 2146121005
    %v1579 = vmul.u32 %v1575, 2146121005
    %v1580 = vmul.u32 %v1576, 2146121005
    %v1581 = vmul.u32 %v1577, 2146121005
    %v1582 = vshrl.u32 %v1578, 15
    %v1583 = vshrl.u32 %v1579, 15
    %v1584 = vshrl.u32 %v1580, 15
    %v1585 = vshrl.u32 %v1581, 15
    %v1586 = vxor.u32 %v1578, %v1582
    %v1587 = vxor.u32 %v1579, %v1583
    %v1588 = vxor.u32 %v1580, %v1584
    %v1589 = vxor.u32 %v1581, %v1585
    %v1590 = vmul.u32 %v1586, 2221713035
    %v1591 = vmul.u32 %v1587, 2221713035
    %v1592 = vmul.u32 %v1588, 2221713035
    %v1593 = vmul.u32 %v1589, 2221713035
    %v1594 = vshrl.u32 %v1590, 16
    %v1595 = vshrl.u32 %v1591, 16
    %v1596 = vshrl.u32 %v1592, 16
    %v1597 = vshrl.u32 %v1593, 16
    %v1598 = vxor.u32 %v1590, %v1594
    %v1599 = vxor.u32 %v1591, %v1595
    %v1600 = vxor.u32 %v1592, %v1596
    %v1601 = vxor.u32 %v1593, %v1597
    %vm1602 = vcmp.ge.u32.totalorder %v1598, 858993459
    %vm1603 = vcmp.ge.u32.totalorder %v1599, 858993459
    %vm1604 = vcmp.ge.u32.totalorder %v1600, 858993459
    %vm1605 = vcmp.ge.u32.totalorder %v1601, 858993459
    %v1606 = vmul.f32 %v1562, 1.25
    %v1607 = vmul.f32 %v1563, 1.25
    %v1608 = vmul.f32 %v1564, 1.25
    %v1609 = vmul.f32 %v1565, 1.25
    %v1610 = vsel %vm1602, %v1606, 0.0
    %v1611 = vsel %vm1603, %v1607, 0.0
    %v1612 = vsel %vm1604, %v1608, 0.0
    %v1613 = vsel %vm1605, %v1609, 0.0
    %v1614 = vld [vmem:[#allocation11] sm:$0xff]
    %v1615 = vld [vmem:[#allocation11 + $0x8] sm:$0xff]
    %v1616 = vld [vmem:[#allocation11 + $0x10] sm:$0xff]
    %v1617 = vld [vmem:[#allocation11 + $0x18] sm:$0xff]
    %v1618 = vld [vmem:[#allocation11 + $0x20] sm:$0xff]
    %v1619 = vld [vmem:[#allocation11 + $0x28] sm:$0xff]
    %v1620 = vld [vmem:[#allocation11 + $0x30] sm:$0xff]
    %v1621 = vld [vmem:[#allocation11 + $0x38] sm:$0xff]
    %v1622 = vld [vmem:[#allocation11 + $0x40] sm:$0xff]
    %v1623 = vld [vmem:[#allocation11 + $0x48] sm:$0xff]
    %v1624 = vld [vmem:[#allocation11 + $0x50] sm:$0xff]
    %v1625 = vld [vmem:[#allocation11 + $0x58] sm:$0xff]
    %v1626 = vld [vmem:[#allocation11 + $0x60] sm:$0xff]
    %v1627 = vld [vmem:[#allocation11 + $0x68] sm:$0xff]
    %v1628 = vld [vmem:[#allocation11 + $0x70] sm:$0xff]
    %v1629 = vld [vmem:[#allocation11 + $0x78] sm:$0xff]
    %v1630 = vld [vmem:[#allocation11 + $0x80] sm:$0xff]
    %v1631 = vld [vmem:[#allocation11 + $0x88] sm:$0xff]
    %v1632 = vld [vmem:[#allocation11 + $0x90] sm:$0xff]
    %v1633 = vld [vmem:[#allocation11 + $0x98] sm:$0xff]
    %v1634 = vld [vmem:[#allocation11 + $0xa0] sm:$0xff]
    %v1635 = vld [vmem:[#allocation11 + $0xa8] sm:$0xff]
    %v1636 = vld [vmem:[#allocation11 + $0xb0] sm:$0xff]
    %v1637 = vld [vmem:[#allocation11 + $0xb8] sm:$0xff]
    %v1638 = vld [vmem:[#allocation11 + $0xc0] sm:$0xff]
    %v1639 = vld [vmem:[#allocation11 + $0xc8] sm:$0xff]
    %v1640 = vld [vmem:[#allocation11 + $0xd0] sm:$0xff]
    %v1641 = vld [vmem:[#allocation11 + $0xd8] sm:$0xff]
    %v1642 = vld [vmem:[#allocation11 + $0xe0] sm:$0xff]
    %v1643 = vld [vmem:[#allocation11 + $0xe8] sm:$0xff]
    %v1644 = vld [vmem:[#allocation11 + $0xf0] sm:$0xff]
    %v1645 = vld [vmem:[#allocation11 + $0xf8] sm:$0xff]
    %v1646 = vld [vmem:[#allocation11 + $0x100] sm:$0xff]
    %v1647 = vld [vmem:[#allocation11 + $0x108] sm:$0xff]
    %v1648 = vld [vmem:[#allocation11 + $0x110] sm:$0xff]
    %v1649 = vld [vmem:[#allocation11 + $0x118] sm:$0xff]
    %v1650 = vld [vmem:[#allocation11 + $0x120] sm:$0xff]
    %v1651 = vld [vmem:[#allocation11 + $0x128] sm:$0xff]
    %v1652 = vld [vmem:[#allocation11 + $0x130] sm:$0xff]
    %v1653 = vld [vmem:[#allocation11 + $0x138] sm:$0xff]
    %v1654 = vld [vmem:[#allocation11 + $0x140] sm:$0xff]
    %v1655 = vld [vmem:[#allocation11 + $0x148] sm:$0xff]
    %v1656 = vld [vmem:[#allocation11 + $0x150] sm:$0xff]
    %v1657 = vld [vmem:[#allocation11 + $0x158] sm:$0xff]
    %v1658 = vld [vmem:[#allocation11 + $0x160] sm:$0xff]
    %v1659 = vld [vmem:[#allocation11 + $0x168] sm:$0xff]
    %v1660 = vld [vmem:[#allocation11 + $0x170] sm:$0xff]
    %v1661 = vld [vmem:[#allocation11 + $0x178] sm:$0xff]
    %v1662 = vld [vmem:[#allocation11 + $0x180] sm:$0xff]
    %v1663 = vld [vmem:[#allocation11 + $0x188] sm:$0xff]
    %v1664 = vld [vmem:[#allocation11 + $0x190] sm:$0xff]
    %v1665 = vld [vmem:[#allocation11 + $0x198] sm:$0xff]
    %v1666 = vld [vmem:[#allocation11 + $0x1a0] sm:$0xff]
    %v1667 = vld [vmem:[#allocation11 + $0x1a8] sm:$0xff]
    %v1668 = vld [vmem:[#allocation11 + $0x1b0] sm:$0xff]
    %v1669 = vld [vmem:[#allocation11 + $0x1b8] sm:$0xff]
    %v1670 = vld [vmem:[#allocation11 + $0x1c0] sm:$0xff]
    %v1671 = vld [vmem:[#allocation11 + $0x1c8] sm:$0xff]
    %v1672 = vld [vmem:[#allocation11 + $0x1d0] sm:$0xff]
    %v1673 = vld [vmem:[#allocation11 + $0x1d8] sm:$0xff]
    %v1674 = vld [vmem:[#allocation11 + $0x1e0] sm:$0xff]
    %v1675 = vld [vmem:[#allocation11 + $0x1e8] sm:$0xff]
    %v1676 = vld [vmem:[#allocation11 + $0x1f0] sm:$0xff]
    %v1677 = vld [vmem:[#allocation11 + $0x1f8] sm:$0xff]
    %v1678 = vld [vmem:[#allocation11 + $0x200] sm:$0xff]
    %v1679 = vld [vmem:[#allocation11 + $0x208] sm:$0xff]
    %v1680 = vld [vmem:[#allocation11 + $0x210] sm:$0xff]
    %v1681 = vld [vmem:[#allocation11 + $0x218] sm:$0xff]
    %v1682 = vld [vmem:[#allocation11 + $0x220] sm:$0xff]
    %v1683 = vld [vmem:[#allocation11 + $0x228] sm:$0xff]
    %v1684 = vld [vmem:[#allocation11 + $0x230] sm:$0xff]
    %v1685 = vld [vmem:[#allocation11 + $0x238] sm:$0xff]
    %v1686 = vld [vmem:[#allocation11 + $0x240] sm:$0xff]
    %v1687 = vld [vmem:[#allocation11 + $0x248] sm:$0xff]
    %v1688 = vld [vmem:[#allocation11 + $0x250] sm:$0xff]
    %v1689 = vld [vmem:[#allocation11 + $0x258] sm:$0xff]
    %v1690 = vld [vmem:[#allocation11 + $0x260] sm:$0xff]
    %v1691 = vld [vmem:[#allocation11 + $0x268] sm:$0xff]
    %v1692 = vld [vmem:[#allocation11 + $0x270] sm:$0xff]
    %v1693 = vld [vmem:[#allocation11 + $0x278] sm:$0xff]
    %v1694 = vld [vmem:[#allocation11 + $0x280] sm:$0xff]
    %v1695 = vld [vmem:[#allocation11 + $0x288] sm:$0xff]
    %v1696 = vld [vmem:[#allocation11 + $0x290] sm:$0xff]
    %v1697 = vld [vmem:[#allocation11 + $0x298] sm:$0xff]
    %v1698 = vld [vmem:[#allocation11 + $0x2a0] sm:$0xff]
    %v1699 = vld [vmem:[#allocation11 + $0x2a8] sm:$0xff]
    %v1700 = vld [vmem:[#allocation11 + $0x2b0] sm:$0xff]
    %v1701 = vld [vmem:[#allocation11 + $0x2b8] sm:$0xff]
    %v1702 = vld [vmem:[#allocation11 + $0x2c0] sm:$0xff]
    %v1703 = vld [vmem:[#allocation11 + $0x2c8] sm:$0xff]
    %v1704 = vld [vmem:[#allocation11 + $0x2d0] sm:$0xff]
    %v1705 = vld [vmem:[#allocation11 + $0x2d8] sm:$0xff]
    %v1706 = vld [vmem:[#allocation11 + $0x2e0] sm:$0xff]
    %v1707 = vld [vmem:[#allocation11 + $0x2e8] sm:$0xff]
    %v1708 = vld [vmem:[#allocation11 + $0x2f0] sm:$0xff]
    %v1709 = vld [vmem:[#allocation11 + $0x2f8] sm:$0xff]
    %v1710 = vld [vmem:[#allocation11 + $0x300] sm:$0xff]
    %v1711 = vld [vmem:[#allocation11 + $0x308] sm:$0xff]
    %v1712 = vld [vmem:[#allocation11 + $0x310] sm:$0xff]
    %v1713 = vld [vmem:[#allocation11 + $0x318] sm:$0xff]
    %v1714 = vld [vmem:[#allocation11 + $0x320] sm:$0xff]
    %v1715 = vld [vmem:[#allocation11 + $0x328] sm:$0xff]
    %v1716 = vld [vmem:[#allocation11 + $0x330] sm:$0xff]
    %v1717 = vld [vmem:[#allocation11 + $0x338] sm:$0xff]
    %v1718 = vld [vmem:[#allocation11 + $0x340] sm:$0xff]
    %v1719 = vld [vmem:[#allocation11 + $0x348] sm:$0xff]
    %v1720 = vld [vmem:[#allocation11 + $0x350] sm:$0xff]
    %v1721 = vld [vmem:[#allocation11 + $0x358] sm:$0xff]
    %v1722 = vld [vmem:[#allocation11 + $0x360] sm:$0xff]
    %v1723 = vld [vmem:[#allocation11 + $0x368] sm:$0xff]
    %v1724 = vld [vmem:[#allocation11 + $0x370] sm:$0xff]
    %v1725 = vld [vmem:[#allocation11 + $0x378] sm:$0xff]
    %v1726 = vld [vmem:[#allocation11 + $0x380] sm:$0xff]
    %v1727 = vld [vmem:[#allocation11 + $0x388] sm:$0xff]
    %v1728 = vld [vmem:[#allocation11 + $0x390] sm:$0xff]
    %v1729 = vld [vmem:[#allocation11 + $0x398] sm:$0xff]
    %v1730 = vld [vmem:[#allocation11 + $0x3a0] sm:$0xff]
    %v1731 = vld [vmem:[#allocation11 + $0x3a8] sm:$0xff]
    %v1732 = vld [vmem:[#allocation11 + $0x3b0] sm:$0xff]
    %v1733 = vld [vmem:[#allocation11 + $0x3b8] sm:$0xff]
    %v1734 = vld [vmem:[#allocation11 + $0x3c0] sm:$0xff]
    %v1735 = vld [vmem:[#allocation11 + $0x3c8] sm:$0xff]
    %v1736 = vld [vmem:[#allocation11 + $0x3d0] sm:$0xff]
    %v1737 = vld [vmem:[#allocation11 + $0x3d8] sm:$0xff]
    %v1738 = vld [vmem:[#allocation11 + $0x3e0] sm:$0xff]
    %v1739 = vld [vmem:[#allocation11 + $0x3e8] sm:$0xff]
    %v1740 = vld [vmem:[#allocation11 + $0x3f0] sm:$0xff]
    %v1741 = vld [vmem:[#allocation11 + $0x3f8] sm:$0xff]
    %v1742 = vld [vmem:[%s9] sm:$0x3]
    %v1744 = vlaneseq
    %v1745 = vshrl.u32 %v1744, 7
    %v1746 = vsub.s32 0, %v1745
    %v1747 = vrot.slane %v1742, %v1746
    %v1748 = vlaneseq
    %v1749 = vshrl.u32 %v1748, 7
    %v1750 = vsub.s32 1, %v1749
    %v1751 = vrot.slane %v1742, %v1750
    %1754 = vmatprep.subr.mxu0 %v1615
    %1755 = vmatpush1.msra.mxu0 %v1614
    %1756 = vmatprep.subr.mxu0 %v1617
    %1757 = vmatpush1.msra.mxu0 %v1616
    %1758 = vmatprep.subr.mxu0 %v1619
    %1759 = vmatpush1.msra.mxu0 %v1618
    %1760 = vmatprep.subr.mxu0 %v1621
    %1761 = vmatpush1.msra.mxu0 %v1620
    %1762 = vmatprep.subr.mxu0 %v1623
    %1763 = vmatpush1.msra.mxu0 %v1622
    %1764 = vmatprep.subr.mxu0 %v1625
    %1765 = vmatpush1.msra.mxu0 %v1624
    %1766 = vmatprep.subr.mxu0 %v1627
    %1767 = vmatpush1.msra.mxu0 %v1626
    %1768 = vmatprep.subr.mxu0 %v1629
    %1769 = vmatpush1.msra.mxu0 %v1628
    %1770 = vmatprep.subr.mxu0 %v1631
    %1771 = vmatpush1.msra.mxu0 %v1630
    %1772 = vmatprep.subr.mxu0 %v1633
    %1773 = vmatpush1.msra.mxu0 %v1632
    %1774 = vmatprep.subr.mxu0 %v1635
    %1775 = vmatpush1.msra.mxu0 %v1634
    %1776 = vmatprep.subr.mxu0 %v1637
    %1777 = vmatpush1.msra.mxu0 %v1636
    %1778 = vmatprep.subr.mxu0 %v1639
    %1779 = vmatpush1.msra.mxu0 %v1638
    %1780 = vmatprep.subr.mxu0 %v1641
    %1781 = vmatpush1.msra.mxu0 %v1640
    %1782 = vmatprep.subr.mxu0 %v1643
    %1783 = vmatpush1.msra.mxu0 %v1642
    %1784 = vmatprep.subr.mxu0 %v1645
    %1785 = vmatpush1.msra.mxu0 %v1644
    %1786 = vmatprep.subr.mxu0 %v1647
    %1787 = vmatpush1.msra.mxu0 %v1646
    %1788 = vmatprep.subr.mxu0 %v1649
    %1789 = vmatpush1.msra.mxu0 %v1648
    %1790 = vmatprep.subr.mxu0 %v1651
    %1791 = vmatpush1.msra.mxu0 %v1650
    %1792 = vmatprep.subr.mxu0 %v1653
    %1793 = vmatpush1.msra.mxu0 %v1652
    %1794 = vmatprep.subr.mxu0 %v1655
    %1795 = vmatpush1.msra.mxu0 %v1654
    %1796 = vmatprep.subr.mxu0 %v1657
    %1797 = vmatpush1.msra.mxu0 %v1656
    %1798 = vmatprep.subr.mxu0 %v1659
    %1799 = vmatpush1.msra.mxu0 %v1658
    %1800 = vmatprep.subr.mxu0 %v1661
    %1801 = vmatpush1.msra.mxu0 %v1660
    %1802 = vmatprep.subr.mxu0 %v1663
    %1803 = vmatpush1.msra.mxu0 %v1662
    %1804 = vmatprep.subr.mxu0 %v1665
    %1805 = vmatpush1.msra.mxu0 %v1664
    %1806 = vmatprep.subr.mxu0 %v1667
    %1807 = vmatpush1.msra.mxu0 %v1666
    %1808 = vmatprep.subr.mxu0 %v1669
    %1809 = vmatpush1.msra.mxu0 %v1668
    %1810 = vmatprep.subr.mxu0 %v1671
    %1811 = vmatpush1.msra.mxu0 %v1670
    %1812 = vmatprep.subr.mxu0 %v1673
    %1813 = vmatpush1.msra.mxu0 %v1672
    %1814 = vmatprep.subr.mxu0 %v1675
    %1815 = vmatpush1.msra.mxu0 %v1674
    %1816 = vmatprep.subr.mxu0 %v1677
    %1817 = vmatpush1.msra.mxu0 %v1676
    %1818 = vmatprep.mubr.f32.mxu0 %v1611
    %1819 = vmatmul.mubr.f32.gmra.mrb[0].mxu0 %v1610
    %v1820 = vpop.f32.mrb[0].mxu0
    %v1821 = vadd.f32 %v1747, %v1820
    %v1822 = vpop.f32.mrb[0].mxu0
    %v1823 = vadd.f32 %v1751, %v1822
    %1824 = vdwg.mxu0
    %1825 = vmatprep.subr.mxu0 %v1679
    %1826 = vmatpush1.msra.mxu0 %v1678
    %1827 = vmatprep.subr.mxu0 %v1681
    %1828 = vmatpush1.msra.mxu0 %v1680
    %1829 = vmatprep.subr.mxu0 %v1683
    %1830 = vmatpush1.msra.mxu0 %v1682
    %1831 = vmatprep.subr.mxu0 %v1685
    %1832 = vmatpush1.msra.mxu0 %v1684
    %1833 = vmatprep.subr.mxu0 %v1687
    %1834 = vmatpush1.msra.mxu0 %v1686
    %1835 = vmatprep.subr.mxu0 %v1689
    %1836 = vmatpush1.msra.mxu0 %v1688
    %1837 = vmatprep.subr.mxu0 %v1691
    %1838 = vmatpush1.msra.mxu0 %v1690
    %1839 = vmatprep.subr.mxu0 %v1693
    %1840 = vmatpush1.msra.mxu0 %v1692
    %1841 = vmatprep.subr.mxu0 %v1695
    %1842 = vmatpush1.msra.mxu0 %v1694
    %1843 = vmatprep.subr.mxu0 %v1697
    %1844 = vmatpush1.msra.mxu0 %v1696
    %1845 = vmatprep.subr.mxu0 %v1699
    %1846 = vmatpush1.msra.mxu0 %v1698
    %1847 = vmatprep.subr.mxu0 %v1701
    %1848 = vmatpush1.msra.mxu0 %v1700
    %1849 = vmatprep.subr.mxu0 %v1703
    %1850 = vmatpush1.msra.mxu0 %v1702
    %1851 = vmatprep.subr.mxu0 %v1705
    %1852 = vmatpush1.msra.mxu0 %v1704
    %1853 = vmatprep.subr.mxu0 %v1707
    %1854 = vmatpush1.msra.mxu0 %v1706
    %1855 = vmatprep.subr.mxu0 %v1709
    %1856 = vmatpush1.msra.mxu0 %v1708
    %1857 = vmatprep.subr.mxu0 %v1711
    %1858 = vmatpush1.msra.mxu0 %v1710
    %1859 = vmatprep.subr.mxu0 %v1713
    %1860 = vmatpush1.msra.mxu0 %v1712
    %1861 = vmatprep.subr.mxu0 %v1715
    %1862 = vmatpush1.msra.mxu0 %v1714
    %1863 = vmatprep.subr.mxu0 %v1717
    %1864 = vmatpush1.msra.mxu0 %v1716
    %1865 = vmatprep.subr.mxu0 %v1719
    %1866 = vmatpush1.msra.mxu0 %v1718
    %1867 = vmatprep.subr.mxu0 %v1721
    %1868 = vmatpush1.msra.mxu0 %v1720
    %1869 = vmatprep.subr.mxu0 %v1723
    %1870 = vmatpush1.msra.mxu0 %v1722
    %1871 = vmatprep.subr.mxu0 %v1725
    %1872 = vmatpush1.msra.mxu0 %v1724
    %1873 = vmatprep.subr.mxu0 %v1727
    %1874 = vmatpush1.msra.mxu0 %v1726
    %1875 = vmatprep.subr.mxu0 %v1729
    %1876 = vmatpush1.msra.mxu0 %v1728
    %1877 = vmatprep.subr.mxu0 %v1731
    %1878 = vmatpush1.msra.mxu0 %v1730
    %1879 = vmatprep.subr.mxu0 %v1733
    %1880 = vmatpush1.msra.mxu0 %v1732
    %1881 = vmatprep.subr.mxu0 %v1735
    %1882 = vmatpush1.msra.mxu0 %v1734
    %1883 = vmatprep.subr.mxu0 %v1737
    %1884 = vmatpush1.msra.mxu0 %v1736
    %1885 = vmatprep.subr.mxu0 %v1739
    %1886 = vmatpush1.msra.mxu0 %v1738
    %1887 = vmatprep.subr.mxu0 %v1741
    %1888 = vmatpush1.msra.mxu0 %v1740
    %1889 = vmatprep.mubr.f32.mxu0 %v1613
    %1890 = vmatmul.mubr.f32.gmra.mrb[0].mxu0 %v1612
    %v1891 = vpop.f32.mrb[0].mxu0
    %v1892 = vadd.f32 %v1821, %v1891
    %v1893 = vpop.f32.mrb[0].mxu0
    %v1894 = vadd.f32 %v1823, %v1893
    %1895 = vdwg.mxu0
    %v1896 = vmax.f32 %v1892, 0.0
    %v1897 = vmax.f32 %v1894, 0.0
    %v1898 = vadd.s32 %v334, 1028
    %v1899 = vadd.s32 %v335, 1028
    %v1900 = vshrl.u32 %v1898, 16
    %v1901 = vshrl.u32 %v1899, 16
    %v1902 = vxor.u32 %v1898, %v1900
    %v1903 = vxor.u32 %v1899, %v1901
    %v1904 = vmul.u32 %v1902, 2146121005
    %v1905 = vmul.u32 %v1903, 2146121005
    %v1906 = vshrl.u32 %v1904, 15
    %v1907 = vshrl.u32 %v1905, 15
    %v1908 = vxor.u32 %v1904, %v1906
    %v1909 = vxor.u32 %v1905, %v1907
    %v1910 = vmul.u32 %v1908, 2221713035
    %v1911 = vmul.u32 %v1909, 2221713035
    %v1912 = vshrl.u32 %v1910, 16
    %v1913 = vshrl.u32 %v1911, 16
    %v1914 = vxor.u32 %v1910, %v1912
    %v1915 = vxor.u32 %v1911, %v1913
    %vm1916 = vcmp.ge.u32.totalorder %v1914, 858993459
    %vm1917 = vcmp.ge.u32.totalorder %v1915, 858993459
    %v1918 = vmul.f32 %v1896, 1.25
    %v1919 = vmul.f32 %v1897, 1.25
    %v1920 = vsel %vm1916, %v1918, 0.0
    %v1921 = vsel %vm1917, %v1919, 0.0
    %v1922 = vld [vmem:[#allocation12] sm:$0xff]
    %v1923 = vld [vmem:[#allocation12 + $0x8] sm:$0xff]
    %v1924 = vld [vmem:[#allocation12 + $0x10] sm:$0xff]
    %v1925 = vld [vmem:[#allocation12 + $0x18] sm:$0xff]
    %v1926 = vld [vmem:[#allocation12 + $0x20] sm:$0xff]
    %v1927 = vld [vmem:[#allocation12 + $0x28] sm:$0xff]
    %v1928 = vld [vmem:[#allocation12 + $0x30] sm:$0xff]
    %v1929 = vld [vmem:[#allocation12 + $0x38] sm:$0xff]
    %v1930 = vld [vmem:[#allocation12 + $0x40] sm:$0xff]
    %v1931 = vld [vmem:[#allocation12 + $0x48] sm:$0xff]
    %v1932 = vld [vmem:[#allocation12 + $0x50] sm:$0xff]
    %v1933 = vld [vmem:[#allocation12 + $0x58] sm:$0xff]
    %v1934 = vld [vmem:[#allocation12 + $0x60] sm:$0xff]
    %v1935 = vld [vmem:[#allocation12 + $0x68] sm:$0xff]
    %v1936 = vld [vmem:[#allocation12 + $0x70] sm:$0xff]
    %v1937 = vld [vmem:[#allocation12 + $0x78] sm:$0xff]
    %v1938 = vld [vmem:[#allocation12 + $0x80] sm:$0xff]
    %v1939 = vld [vmem:[#allocation12 + $0x88] sm:$0xff]
    %v1940 = vld [vmem:[#allocation12 + $0x90] sm:$0xff]
    %v1941 = vld [vmem:[#allocation12 + $0x98] sm:$0xff]
    %v1942 = vld [vmem:[#allocation12 + $0xa0] sm:$0xff]
    %v1943 = vld [vmem:[#allocation12 + $0xa8] sm:$0xff]
    %v1944 = vld [vmem:[#allocation12 + $0xb0] sm:$0xff]
    %v1945 = vld [vmem:[#allocation12 + $0xb8] sm:$0xff]
    %v1946 = vld [vmem:[#allocation12 + $0xc0] sm:$0xff]
    %v1947 = vld [vmem:[#allocation12 + $0xc8] sm:$0xff]
    %v1948 = vld [vmem:[#allocation12 + $0xd0] sm:$0xff]
    %v1949 = vld [vmem:[#allocation12 + $0xd8] sm:$0xff]
    %v1950 = vld [vmem:[#allocation12 + $0xe0] sm:$0xff]
    %v1951 = vld [vmem:[#allocation12 + $0xe8] sm:$0xff]
    %v1952 = vld [vmem:[#allocation12 + $0xf0] sm:$0xff]
    %v1953 = vld [vmem:[#allocation12 + $0xf8] sm:$0xff]
    %v1954 = vld [vmem:[%s11] sm:$0x1]
    %v1956 = vlaneseq
    %v1957 = vshrl.u32 %v1956, 7
    %v1958 = vsub.s32 0, %v1957
    %v1959 = vrot.slane %v1954, %v1958
    %1961 = vmatprep.subr.mxu0 0.0
    %1962 = vmatpush1.msra.mxu0 %v1922
    %1963 = vmatprep.subr.mxu0 0.0
    %1964 = vmatpush1.msra.mxu0 %v1923
    %1965 = vmatprep.subr.mxu0 0.0
    %1966 = vmatpush1.msra.mxu0 %v1924
    %1967 = vmatprep.subr.mxu0 0.0
    %1968 = vmatpush1.msra.mxu0 %v1925
    %1969 = vmatprep.subr.mxu0 0.0
    %1970 = vmatpush1.msra.mxu0 %v1926
    %1971 = vmatprep.subr.mxu0 0.0
    %1972 = vmatpush1.msra.mxu0 %v1927
    %1973 = vmatprep.subr.mxu0 0.0
    %1974 = vmatpush1.msra.mxu0 %v1928
    %1975 = vmatprep.subr.mxu0 0.0
    %1976 = vmatpush1.msra.mxu0 %v1929
    %1977 = vmatprep.subr.mxu0 0.0
    %1978 = vmatpush1.msra.mxu0 %v1930
    %1979 = vmatprep.subr.mxu0 0.0
    %1980 = vmatpush1.msra.mxu0 %v1931
    %1981 = vmatprep.subr.mxu0 0.0
    %1982 = vmatpush1.msra.mxu0 %v1932
    %1983 = vmatprep.subr.mxu0 0.0
    %1984 = vmatpush1.msra.mxu0 %v1933
    %1985 = vmatprep.subr.mxu0 0.0
    %1986 = vmatpush1.msra.mxu0 %v1934
    %1987 = vmatprep.subr.mxu0 0.0
    %1988 = vmatpush1.msra.mxu0 %v1935
    %1989 = vmatprep.subr.mxu0 0.0
    %1990 = vmatpush1.msra.mxu0 %v1936
    %1991 = vmatprep.subr.mxu0 0.0
    %1992 = vmatpush1.msra.mxu0 %v1937
    %1993 = vmatprep.subr.mxu0 0.0
    %1994 = vmatpush1.msra.mxu0 %v1938
    %1995 = vmatprep.subr.mxu0 0.0
    %1996 = vmatpush1.msra.mxu0 %v1939
    %1997 = vmatprep.subr.mxu0 0.0
    %1998 = vmatpush1.msra.mxu0 %v1940
    %1999 = vmatprep.subr.mxu0 0.0
    %2000 = vmatpush1.msra.mxu0 %v1941
    %2001 = vmatprep.subr.mxu0 0.0
    %2002 = vmatpush1.msra.mxu0 %v1942
    %2003 = vmatprep.subr.mxu0 0.0
    %2004 = vmatpush1.msra.mxu0 %v1943
    %2005 = vmatprep.subr.mxu0 0.0
    %2006 = vmatpush1.msra.mxu0 %v1944
    %2007 = vmatprep.subr.mxu0 0.0
    %2008 = vmatpush1.msra.mxu0 %v1945
    %2009 = vmatprep.subr.mxu0 0.0
    %2010 = vmatpush1.msra.mxu0 %v1946
    %2011 = vmatprep.subr.mxu0 0.0
    %2012 = vmatpush1.msra.mxu0 %v1947
    %2013 = vmatprep.subr.mxu0 0.0
    %2014 = vmatpush1.msra.mxu0 %v1948
    %2015 = vmatprep.subr.mxu0 0.0
    %2016 = vmatpush1.msra.mxu0 %v1949
    %2017 = vmatprep.subr.mxu0 0.0
    %2018 = vmatpush1.msra.mxu0 %v1950
    %2019 = vmatprep.subr.mxu0 0.0
    %2020 = vmatpush1.msra.mxu0 %v1951
    %2021 = vmatprep.subr.mxu0 0.0
    %2022 = vmatpush1.msra.mxu0 %v1952
    %2023 = vmatprep.subr.mxu0 0.0
    %2024 = vmatpush1.msra.mxu0 %v1953
    %2025 = vmatprep.mubr.f32.mxu0 %v1921
    %2026 = vmatmul.mubr.f32.gmra.mrb[0].mxu0 %v1920
    %v2027 = vpop.f32.mrb[0].mxu0
    %v2028 = vadd.f32 %v1959, %v2027
    %v2029 = vpop.f32.mrb[0].mxu0
    %2030 = vdwg.mxu0
    %2031 = vst [vmem:[#allocation14] sm:$0xff] %v2028
    // Predicated region
    $region74: #{tpu_custom_call.1} parent=1 // pred_check
      _
    $region75: #{tpu_custom_call.1} parent=1 // pred_check_branch
      %2033 = sbr.rel (0) target = $region77
    $region76: #{tpu_custom_call.1} parent=1 // pred_region
      %s2035 = ssub.s32 128, 128
      %2036 = vsyncadd [#allocation5], %s2035
      %s2038 = sshll.u32 [#allocation14], 4
      %s2039 = int_to_ptr.vmem [resolvable:$true] %s2038
      %2041 = dma.vmem_to_hbm [thread:$0]  %s2039, 128, %s12, [#allocation5]
    $region77: #{tpu_custom_call.1} parent=1 // pred_fallthru
      _
    // Predicated region
    $region78: #{tpu_custom_call.1} parent=1 // pred_check
      _
    $region79: #{tpu_custom_call.1} parent=1 // pred_check_branch
      %2043 = sbr.rel (0) target = $region81
    $region80: #{tpu_custom_call.1} parent=1 // pred_region
      %2044 = dma.done [#allocation5], 128
    $region81: #{tpu_custom_call.1} parent=1 // pred_fallthru
      _
    %2045 = vsyncpa [#allocation4], 1
    %2046 = vsyncpa [#allocation7], 1
    %2047 = vsyncpa [#allocation10], 1
    %2048 = vsyncpa [#allocation13], 1
    %2049 = vsyncpa [#allocation5], 1

</llo_original>
